<compile_context>
chip_gen: v6e
topology: v6e:2x2x1
jax: 0.10.0
libtpu: 0.0.40
codegen_flags: <defaults>
</compile_context>

<pallas_src>
import jax
import jax.numpy as jnp
from jax.experimental import pallas as pl
from jax.experimental.pallas import tpu as pltpu


def _round_up(x, m):
    return ((x + m - 1) // m) * m


# ----------------------------------------------------------------------------
# Tiled linear kernel (final fc layer): out = x @ w + b
# ----------------------------------------------------------------------------
def linear_kernel(x_ref, w_ref, b_ref, o_ref):
    o_ref[...] = (jnp.dot(x_ref[...], w_ref[...],
                          preferred_element_type=jnp.float32)
                  + b_ref[...]).astype(o_ref.dtype)


def run_linear(x, w, b, *, tm_target=512, tn_target=512):
    """x: (M, K), w: (K, N) with N pre-padded to 128, b: (N,) -> (M, N) f32."""
    M, K = x.shape
    N = w.shape[1]
    tm = min(tm_target, _round_up(M, 8))
    tn = min(tn_target, _round_up(N, 128))
    M_pad = _round_up(M, tm)
    N_pad = _round_up(N, tn)

    x_p = x if M_pad == M else jnp.pad(x, ((0, M_pad - M), (0, 0)))
    w_p = w if N_pad == N else jnp.pad(w, ((0, 0), (0, N_pad - N)))
    b_p = b if N_pad == N else jnp.pad(b, ((0, N_pad - N),))
    if x_p.dtype != w_p.dtype:
        x_p = x_p.astype(w_p.dtype)
    b_p = b_p.astype(jnp.float32).reshape(1, N_pad)

    out = pl.pallas_call(
        linear_kernel,
        out_shape=jax.ShapeDtypeStruct((M_pad, N_pad), jnp.float32),
        grid_spec=pltpu.PrefetchScalarGridSpec(
            num_scalar_prefetch=0,
            grid=(M_pad // tm, N_pad // tn),
            in_specs=[
                pl.BlockSpec((tm, K), lambda i, j: (i, 0)),
                pl.BlockSpec((K, tn), lambda i, j: (0, j)),
                pl.BlockSpec((1, tn), lambda i, j: (0, j)),
            ],
            out_specs=pl.BlockSpec((tm, tn), lambda i, j: (i, j)),
        ),
        compiler_params=pltpu.CompilerParams(
            dimension_semantics=("parallel", "parallel")),
    )(x_p, w_p, b_p)
    if M_pad != M or N_pad != N:
        out = out[:M, :N]
    return out


# ----------------------------------------------------------------------------
# Fused LSTM layer kernel: input projection + recurrence for one time chunk.
# ----------------------------------------------------------------------------
def lstm_layer_kernel(x_ref, wih_ref, b_ref, whh_ref, h0_ref, c0_ref,
                      y_ref, hT_ref, cT_ref, gx_sc, h_sc, c_sc):
    """One (batch-tile, time-chunk) grid step of a single LSTM layer.

    x_ref  : (Tc, Bt, Din) bf16   input chunk, time-major
    wih_ref: (Din, 4H)     bf16   input->gates weights, columns (i, f, o, g)
    b_ref  : (1, 4H)       f32    combined bias b_ih + b_hh
    whh_ref: (H, 4H)       bf16   hidden->gates weights, columns (i, f, o, g)
    h0/c0  : (Bt, H)       f32    initial state for this batch tile
    y_ref  : (Tc, Bt, H)   bf16   hidden outputs (time-major)
    hT/cT  : (Bt, H)       f32    final state (written on last chunk only)
    gx_sc  : (Tc, Bt, 4H)  f32    chunk gate pre-activations (scratch)
    h_sc/c_sc: (Bt, H)     f32    state carried across chunks (scratch)
    """
    c_idx = pl.program_id(1)
    last = pl.num_programs(1) - 1
    Tc = x_ref.shape[0]
    H = h_sc.shape[-1]

    @pl.when(c_idx == 0)
    def _():
        h_sc[...] = h0_ref[...]
        c_sc[...] = c0_ref[...]

    # ---- Chunk-wide input projection: off the serial h-dependency chain. ----
    w_ih = wih_ref[...]
    bias = b_ref[...]

    def proj(tt, val):
        gx_sc[tt] = (jnp.dot(x_ref[tt], w_ih,
                             preferred_element_type=jnp.float32) + bias)
        return val

    if Tc <= 8:
        for tt in range(Tc):
            proj(tt, 0)
    else:
        jax.lax.fori_loop(0, Tc, proj, 0, unroll=8)

    # ---- Serial recurrence over the chunk. -----------------------------------
    w_hh = whh_ref[...]

    def step(tt, carry):
        h, cell = carry
        gates = gx_sc[tt] + jnp.dot(h.astype(w_hh.dtype), w_hh,
                                    preferred_element_type=jnp.float32)
        # Gate order (i, f, o | g): sigmoid over 3H lanes, tanh over H lanes.
        sig = jax.nn.sigmoid(gates[:, :3 * H])
        g_g = jnp.tanh(gates[:, 3 * H:])
        i_g = sig[:, 0 * H:1 * H]
        f_g = sig[:, 1 * H:2 * H]
        o_g = sig[:, 2 * H:3 * H]
        cell = f_g * cell + i_g * g_g
        h = o_g * jnp.tanh(cell)
        y_ref[tt] = h.astype(y_ref.dtype)
        return h, cell

    carry = (h_sc[...], c_sc[...])
    if Tc <= 8:
        # Short chunk: full static unroll (bounded live ranges).
        for tt in range(Tc):
            carry = step(tt, carry)
    else:
        # Longer chunk: fori_loop keeps LLO visibility without vreg blow-up.
        carry = jax.lax.fori_loop(0, Tc, step, carry, unroll=8)
    h, cell = carry

    h_sc[...] = h
    c_sc[...] = cell

    @pl.when(c_idx == last)
    def _():
        hT_ref[...] = h
        cT_ref[...] = cell


def _choose_time_chunk(T, Bt, d_in, H, budget_bytes=20 * 1024 * 1024):
    """Largest divisor-chunk of T whose pipeline buffers fit the VMEM budget."""
    def chunk_bytes(tc):
        x_blk = tc * Bt * d_in * 2 * 2     # bf16 input block, double-buffered
        y_blk = tc * Bt * H * 2 * 2        # bf16 output block, double-buffered
        gx = tc * Bt * 4 * H * 4           # f32 gate-preact scratch
        return x_blk + y_blk + gx
    for tc in range(T, 0, -1):
        if T % tc == 0 and chunk_bytes(tc) <= budget_bytes:
            return tc
    return 1


def run_lstm_layer(x_tm, w_ih, b, w_hh, h0, c0):
    """x_tm: (T, B, Din) bf16 time-major -> (y (T,B,H) bf16, hT, cT f32)."""
    T, B, Din = x_tm.shape
    H = h0.shape[-1]
    G = 4 * H
    # Optional batch-tile axis: lets v7x's two TensorCores split the
    # batch-independent recurrence; harmless on single-TC v5e/v6e.
    nb = 2 if (B >= 16 and B % 16 == 0) else 1
    Bt = B // nb
    Tc = _choose_time_chunk(T, Bt, Din, H)
    n_chunks = T // Tc

    y, hT, cT = pl.pallas_call(
        lstm_layer_kernel,
        out_shape=(jax.ShapeDtypeStruct((T, B, H), jnp.bfloat16),
                   jax.ShapeDtypeStruct((B, H), jnp.float32),
                   jax.ShapeDtypeStruct((B, H), jnp.float32)),
        grid_spec=pltpu.PrefetchScalarGridSpec(
            num_scalar_prefetch=0,
            grid=(nb, n_chunks),
            in_specs=[
                pl.BlockSpec((Tc, Bt, Din), lambda bi, ci: (ci, bi, 0)),
                pl.BlockSpec((Din, G), lambda bi, ci: (0, 0)),
                pl.BlockSpec((1, G), lambda bi, ci: (0, 0)),
                pl.BlockSpec((H, G), lambda bi, ci: (0, 0)),
                pl.BlockSpec((Bt, H), lambda bi, ci: (bi, 0)),
                pl.BlockSpec((Bt, H), lambda bi, ci: (bi, 0)),
            ],
            out_specs=(
                pl.BlockSpec((Tc, Bt, H), lambda bi, ci: (ci, bi, 0)),
                pl.BlockSpec((Bt, H), lambda bi, ci: (bi, 0)),
                pl.BlockSpec((Bt, H), lambda bi, ci: (bi, 0)),
            ),
            scratch_shapes=[pltpu.VMEM((Tc, Bt, G), jnp.float32),
                            pltpu.VMEM((Bt, H), jnp.float32),
                            pltpu.VMEM((Bt, H), jnp.float32)]),
        compiler_params=pltpu.CompilerParams(
            dimension_semantics=("parallel", "arbitrary"),
            vmem_limit_bytes=32 * 1024 * 1024),
    )(x_tm, w_ih, b, w_hh, h0, c0)
    return y, hT, cT


# ----------------------------------------------------------------------------
# WordLSTM_with_Glove forward (Pallas-backed, eval mode)
# ----------------------------------------------------------------------------
class WordLSTMWithGlovePallas:
    def __init__(self, vocab_size, n_hidden=256, n_layers=4, emb_dim=100,
                 drop_prob=0.3, seed=0, param_dtype=jnp.bfloat16):
        self.vocab_size = vocab_size
        self.n_hidden = n_hidden
        self.n_layers = n_layers
        self.emb_dim = emb_dim
        self.drop_prob = drop_prob
        self.emb_dim_pad = _round_up(emb_dim, 128)
        self.vocab_pad = _round_up(vocab_size, 128)

        key = jax.random.PRNGKey(seed)
        ks = jax.random.split(key, 1 + 4 * n_layers + 2)
        k = iter(ks)
        scale = 1.0 / float(n_hidden) ** 0.5
        H = n_hidden
        G = 4 * H

        # Frozen embedding table (stand-in for the GloVe matrix), padded to a
        # lane-aligned width once at construction; padding_idx=0 row zeroed.
        emb = jax.random.normal(next(k), (vocab_size, emb_dim), jnp.float32)
        emb = emb.at[0].set(0.0)
        emb = jnp.pad(emb, ((0, 0), (0, self.emb_dim_pad - emb_dim)))
        self.emb = emb.astype(param_dtype)

        # Per-layer LSTM weights, pre-transposed for x @ W, bf16 for the MXU;
        # combined bias (b_ih + b_hh) kept in f32.  Gate columns are laid out
        # (i, f, o, g); porting real PyTorch weights would require permuting
        # nn.LSTM's (i, f, g, o) column blocks accordingly.
        self.w_ih, self.w_hh, self.b = [], [], []
        for layer in range(n_layers):
            d_in = emb_dim if layer == 0 else n_hidden
            w_ih = jax.random.uniform(next(k), (d_in, G), minval=-scale,
                                      maxval=scale, dtype=jnp.float32)
            if layer == 0:
                w_ih = jnp.pad(w_ih, ((0, self.emb_dim_pad - emb_dim), (0, 0)))
            w_hh = jax.random.uniform(next(k), (H, G), minval=-scale,
                                      maxval=scale, dtype=jnp.float32)
            b_ih = jax.random.uniform(next(k), (G,), minval=-scale,
                                      maxval=scale, dtype=jnp.float32)
            b_hh = jax.random.uniform(next(k), (G,), minval=-scale,
                                      maxval=scale, dtype=jnp.float32)
            self.w_ih.append(w_ih.astype(param_dtype))
            self.w_hh.append(w_hh.astype(param_dtype))
            self.b.append((b_ih + b_hh).reshape(1, G))

        # fc: (H, V_pad) pre-transposed bf16, bias (V_pad,) f32, padded once.
        fc_w = jax.random.uniform(next(k), (H, vocab_size), minval=-scale,
                                  maxval=scale, dtype=jnp.float32)
        fc_b = jax.random.uniform(next(k), (vocab_size,), minval=-scale,
                                  maxval=scale, dtype=jnp.float32)
        self.fc_w = jnp.pad(
            fc_w, ((0, 0), (0, self.vocab_pad - vocab_size))).astype(param_dtype)
        self.fc_b = jnp.pad(fc_b, ((0, self.vocab_pad - vocab_size),))

    def init_hidden(self, batch_size):
        shape = (self.n_layers, batch_size, self.n_hidden)
        return (jnp.zeros(shape, jnp.float32), jnp.zeros(shape, jnp.float32))

    def forward(self, x, hidden):
        """x: (B, T) int32 token ids; hidden: (h0, c0) each (L, B, H)."""
        B, T = x.shape
        H = self.n_hidden
        h0_all, c0_all = hidden

        # Embedding lookup (XLA gather glue; the table is frozen), bf16 output.
        emb_out = jnp.take(self.emb, x, axis=0)            # (B, T, E_pad)

        # Time-major layout for the recurrent stack; pad batch to a sublane
        # multiple so in-kernel tiles stay (8,128)-aligned.
        B_pad = _round_up(max(B, 8), 8)
        layer_in = jnp.transpose(emb_out, (1, 0, 2))       # (T, B, E_pad)
        if B_pad != B:
            layer_in = jnp.pad(layer_in, ((0, 0), (0, B_pad - B), (0, 0)))
            h0_all = jnp.pad(h0_all, ((0, 0), (0, B_pad - B), (0, 0)))
            c0_all = jnp.pad(c0_all, ((0, 0), (0, B_pad - B), (0, 0)))

        h_finals, c_finals = [], []
        for layer in range(self.n_layers):
            y, hT, cT = run_lstm_layer(layer_in, self.w_ih[layer],
                                       self.b[layer], self.w_hh[layer],
                                       h0_all[layer], c0_all[layer])
            h_finals.append(hT[:B])
            c_finals.append(cT[:B])
            # TODO(synk): inter-layer and output dropout are identity (eval
            # mode); training-mode Bernoulli masking not implemented.
            layer_in = y                                   # (T, B_pad, H) bf16

        # Back to batch-first so reshape(-1, n_hidden) matches PyTorch's
        # batch_first row ordering.
        y_bf = jnp.transpose(layer_in[:, :B, :], (1, 0, 2))   # (B, T, H)
        flat = y_bf.reshape(B * T, H)
        out = run_linear(flat, self.fc_w, self.fc_b)           # (B*T, V_pad)
        out = out[:, :self.vocab_size]
        hidden_out = (jnp.stack(h_finals, 0), jnp.stack(c_finals, 0))
        return out, hidden_out


# ----------------------------------------------------------------------------
if __name__ == "__main__":
    vocab_size = 64
    n_hidden = 32
    n_layers = 2
    emb_dim = 100      # GloVe-100 per the reference module
    B, T = 2, 8

    model = WordLSTMWithGlovePallas(vocab_size=vocab_size, n_hidden=n_hidden,
                                    n_layers=n_layers, emb_dim=emb_dim, seed=0)

    key = jax.random.PRNGKey(0)
    x = jax.random.randint(key, (B, T), 0, vocab_size, dtype=jnp.int32)
    hidden = model.init_hidden(B)

    out, (h_n, c_n) = model.forward(x, hidden)
    out = jax.block_until_ready(out)
    h_n = jax.block_until_ready(h_n)
    c_n = jax.block_until_ready(c_n)

    assert out.shape == (B * T, vocab_size)
    assert h_n.shape == (n_layers, B, n_hidden)
    assert c_n.shape == (n_layers, B, n_hidden)
    assert jnp.all(jnp.isfinite(out))
    assert jnp.all(jnp.isfinite(h_n)) and jnp.all(jnp.isfinite(c_n))
    print("KERNEL_OK")
</pallas_src>

<mosaic_0001>
module attributes {stable_mosaic.version = 11 : i64} {
  func.func @lstm_layer_kernel(%arg0: i32, %arg1: i32, %arg2: memref<8x8x128xbf16, #tpu.memory_space<vmem>>, %arg3: memref<128x128xbf16, #tpu.memory_space<vmem>>, %arg4: memref<1x128xf32, #tpu.memory_space<vmem>>, %arg5: memref<32x128xbf16, #tpu.memory_space<vmem>>, %arg6: memref<8x32xf32, #tpu.memory_space<vmem>>, %arg7: memref<8x32xf32, #tpu.memory_space<vmem>>, %arg8: memref<8x8x32xbf16, #tpu.memory_space<vmem>>, %arg9: memref<8x32xf32, #tpu.memory_space<vmem>>, %arg10: memref<8x32xf32, #tpu.memory_space<vmem>>, %arg11: memref<8x8x128xf32, #tpu.memory_space<vmem>>, %arg12: memref<8x32xf32, #tpu.memory_space<vmem>>, %arg13: memref<8x32xf32, #tpu.memory_space<vmem>>) attributes {dimension_semantics = [#tpu.dimension_semantics<parallel>, #tpu.dimension_semantics<arbitrary>], iteration_bounds = array<i64: 1, 1>, scalar_prefetch = 0 : i64, scratch_operands = 3 : i64, tpu.core_type = #tpu.core_type<tc>, window_params = [{transform_indices = @transform_0, window_bounds = array<i64: 8, 8, 128>}, {pipeline_mode = #tpu.pipeline_mode<synchronous>, transform_indices = @transform_1, window_bounds = array<i64: 128, 128>}, {pipeline_mode = #tpu.pipeline_mode<synchronous>, transform_indices = @transform_2, window_bounds = array<i64: 1, 128>}, {pipeline_mode = #tpu.pipeline_mode<synchronous>, transform_indices = @transform_3, window_bounds = array<i64: 32, 128>}, {transform_indices = @transform_4, window_bounds = array<i64: 8, 32>}, {transform_indices = @transform_5, window_bounds = array<i64: 8, 32>}, {transform_indices = @transform_6, window_bounds = array<i64: 8, 8, 32>}, {transform_indices = @transform_7, window_bounds = array<i64: 8, 32>}, {transform_indices = @transform_8, window_bounds = array<i64: 8, 32>}]} {
    %c0_i32 = arith.constant 0 : i32
    %0 = arith.cmpi eq, %arg1, %c0_i32 : i32
    %1 = arith.extui %0 : i1 to i32
    %c0_i32_0 = arith.constant 0 : i32
    %2 = arith.cmpi ne, %1, %c0_i32_0 : i32
    scf.if %2 {
      %c0_128 = arith.constant 0 : index
      %c0_129 = arith.constant 0 : index
      %277 = vector.load %arg6[%c0_128, %c0_129] : memref<8x32xf32, #tpu.memory_space<vmem>>, vector<8x32xf32>
      %c0_130 = arith.constant 0 : index
      %c0_131 = arith.constant 0 : index
      %278 = vector.load %arg12[%c0_130, %c0_131] : memref<8x32xf32, #tpu.memory_space<vmem>>, vector<8x32xf32>
      tpu.vector_store %arg12[%c0_130, %c0_131], %277 {strides = array<i32>} : memref<8x32xf32, #tpu.memory_space<vmem>>, vector<8x32xf32>,
      %c0_132 = arith.constant 0 : index
      %c0_133 = arith.constant 0 : index
      %279 = vector.load %arg7[%c0_132, %c0_133] : memref<8x32xf32, #tpu.memory_space<vmem>>, vector<8x32xf32>
      %c0_134 = arith.constant 0 : index
      %c0_135 = arith.constant 0 : index
      %280 = vector.load %arg13[%c0_134, %c0_135] : memref<8x32xf32, #tpu.memory_space<vmem>>, vector<8x32xf32>
      tpu.vector_store %arg13[%c0_134, %c0_135], %279 {strides = array<i32>} : memref<8x32xf32, #tpu.memory_space<vmem>>, vector<8x32xf32>,
    } else {
    }
    %c0 = arith.constant 0 : index
    %c0_1 = arith.constant 0 : index
    %3 = vector.load %arg3[%c0, %c0_1] : memref<128x128xbf16, #tpu.memory_space<vmem>>, vector<128x128xbf16>
    %c0_2 = arith.constant 0 : index
    %c0_3 = arith.constant 0 : index
    %4 = vector.load %arg4[%c0_2, %c0_3] : memref<1x128xf32, #tpu.memory_space<vmem>>, vector<1x128xf32>
    %c0_4 = arith.constant 0 : index
    %c0_5 = arith.constant 0 : index
    %c0_6 = arith.constant 0 : index
    %5 = vector.load %arg2[%c0_4, %c0_5, %c0_6] : memref<8x8x128xbf16, #tpu.memory_space<vmem>>, vector<1x8x128xbf16>
    %6 = vector.shape_cast %5 : vector<1x8x128xbf16> to vector<8x128xbf16>
    %cst = arith.constant dense<0.000000e+00> : vector<8x128xf32>
    %7 = tpu.matmul %6, %3, %cst {dimension_numbers = #tpu.dot_dimension_numbers<[1], [0], [0], [1], [0, 0, 1, 1], [], []>} : vector<8x128xbf16>, vector<128x128xbf16>, vector<8x128xf32> -> vector<8x128xf32>
    %8 = vector.broadcast %4 : vector<1x128xf32> to vector<8x128xf32>
    %9 = arith.addf %7, %8 : vector<8x128xf32>
    %c0_7 = arith.constant 0 : index
    %c0_8 = arith.constant 0 : index
    %c0_9 = arith.constant 0 : index
    %10 = vector.load %arg11[%c0_7, %c0_8, %c0_9] : memref<8x8x128xf32, #tpu.memory_space<vmem>>, vector<1x8x128xf32>
    %11 = vector.shape_cast %10 : vector<1x8x128xf32> to vector<8x128xf32>
    %12 = vector.shape_cast %9 : vector<8x128xf32> to vector<1x8x128xf32>
    tpu.vector_store %arg11[%c0_7, %c0_8, %c0_9], %12 {strides = array<i32>} : memref<8x8x128xf32, #tpu.memory_space<vmem>>, vector<1x8x128xf32>,
    %c1 = arith.constant 1 : index
    %c0_10 = arith.constant 0 : index
    %c0_11 = arith.constant 0 : index
    %13 = vector.load %arg2[%c1, %c0_10, %c0_11] : memref<8x8x128xbf16, #tpu.memory_space<vmem>>, vector<1x8x128xbf16>
    %14 = vector.shape_cast %13 : vector<1x8x128xbf16> to vector<8x128xbf16>
    %cst_12 = arith.constant dense<0.000000e+00> : vector<8x128xf32>
    %15 = tpu.matmul %14, %3, %cst_12 {dimension_numbers = #tpu.dot_dimension_numbers<[1], [0], [0], [1], [0, 0, 1, 1], [], []>} : vector<8x128xbf16>, vector<128x128xbf16>, vector<8x128xf32> -> vector<8x128xf32>
    %16 = vector.broadcast %4 : vector<1x128xf32> to vector<8x128xf32>
    %17 = arith.addf %15, %16 : vector<8x128xf32>
    %c1_13 = arith.constant 1 : index
    %c0_14 = arith.constant 0 : index
    %c0_15 = arith.constant 0 : index
    %18 = vector.load %arg11[%c1_13, %c0_14, %c0_15] : memref<8x8x128xf32, #tpu.memory_space<vmem>>, vector<1x8x128xf32>
    %19 = vector.shape_cast %18 : vector<1x8x128xf32> to vector<8x128xf32>
    %20 = vector.shape_cast %17 : vector<8x128xf32> to vector<1x8x128xf32>
    tpu.vector_store %arg11[%c1_13, %c0_14, %c0_15], %20 {strides = array<i32>} : memref<8x8x128xf32, #tpu.memory_space<vmem>>, vector<1x8x128xf32>,
    %c2 = arith.constant 2 : index
    %c0_16 = arith.constant 0 : index
    %c0_17 = arith.constant 0 : index
    %21 = vector.load %arg2[%c2, %c0_16, %c0_17] : memref<8x8x128xbf16, #tpu.memory_space<vmem>>, vector<1x8x128xbf16>
    %22 = vector.shape_cast %21 : vector<1x8x128xbf16> to vector<8x128xbf16>
    %cst_18 = arith.constant dense<0.000000e+00> : vector<8x128xf32>
    %23 = tpu.matmul %22, %3, %cst_18 {dimension_numbers = #tpu.dot_dimension_numbers<[1], [0], [0], [1], [0, 0, 1, 1], [], []>} : vector<8x128xbf16>, vector<128x128xbf16>, vector<8x128xf32> -> vector<8x128xf32>
    %24 = vector.broadcast %4 : vector<1x128xf32> to vector<8x128xf32>
    %25 = arith.addf %23, %24 : vector<8x128xf32>
    %c2_19 = arith.constant 2 : index
    %c0_20 = arith.constant 0 : index
    %c0_21 = arith.constant 0 : index
    %26 = vector.load %arg11[%c2_19, %c0_20, %c0_21] : memref<8x8x128xf32, #tpu.memory_space<vmem>>, vector<1x8x128xf32>
    %27 = vector.shape_cast %26 : vector<1x8x128xf32> to vector<8x128xf32>
    %28 = vector.shape_cast %25 : vector<8x128xf32> to vector<1x8x128xf32>
    tpu.vector_store %arg11[%c2_19, %c0_20, %c0_21], %28 {strides = array<i32>} : memref<8x8x128xf32, #tpu.memory_space<vmem>>, vector<1x8x128xf32>,
    %c3 = arith.constant 3 : index
    %c0_22 = arith.constant 0 : index
    %c0_23 = arith.constant 0 : index
    %29 = vector.load %arg2[%c3, %c0_22, %c0_23] : memref<8x8x128xbf16, #tpu.memory_space<vmem>>, vector<1x8x128xbf16>
    %30 = vector.shape_cast %29 : vector<1x8x128xbf16> to vector<8x128xbf16>
    %cst_24 = arith.constant dense<0.000000e+00> : vector<8x128xf32>
    %31 = tpu.matmul %30, %3, %cst_24 {dimension_numbers = #tpu.dot_dimension_numbers<[1], [0], [0], [1], [0, 0, 1, 1], [], []>} : vector<8x128xbf16>, vector<128x128xbf16>, vector<8x128xf32> -> vector<8x128xf32>
    %32 = vector.broadcast %4 : vector<1x128xf32> to vector<8x128xf32>
    %33 = arith.addf %31, %32 : vector<8x128xf32>
    %c3_25 = arith.constant 3 : index
    %c0_26 = arith.constant 0 : index
    %c0_27 = arith.constant 0 : index
    %34 = vector.load %arg11[%c3_25, %c0_26, %c0_27] : memref<8x8x128xf32, #tpu.memory_space<vmem>>, vector<1x8x128xf32>
    %35 = vector.shape_cast %34 : vector<1x8x128xf32> to vector<8x128xf32>
    %36 = vector.shape_cast %33 : vector<8x128xf32> to vector<1x8x128xf32>
    tpu.vector_store %arg11[%c3_25, %c0_26, %c0_27], %36 {strides = array<i32>} : memref<8x8x128xf32, #tpu.memory_space<vmem>>, vector<1x8x128xf32>,
    %c4 = arith.constant 4 : index
    %c0_28 = arith.constant 0 : index
    %c0_29 = arith.constant 0 : index
    %37 = vector.load %arg2[%c4, %c0_28, %c0_29] : memref<8x8x128xbf16, #tpu.memory_space<vmem>>, vector<1x8x128xbf16>
    %38 = vector.shape_cast %37 : vector<1x8x128xbf16> to vector<8x128xbf16>
    %cst_30 = arith.constant dense<0.000000e+00> : vector<8x128xf32>
    %39 = tpu.matmul %38, %3, %cst_30 {dimension_numbers = #tpu.dot_dimension_numbers<[1], [0], [0], [1], [0, 0, 1, 1], [], []>} : vector<8x128xbf16>, vector<128x128xbf16>, vector<8x128xf32> -> vector<8x128xf32>
    %40 = vector.broadcast %4 : vector<1x128xf32> to vector<8x128xf32>
    %41 = arith.addf %39, %40 : vector<8x128xf32>
    %c4_31 = arith.constant 4 : index
    %c0_32 = arith.constant 0 : index
    %c0_33 = arith.constant 0 : index
    %42 = vector.load %arg11[%c4_31, %c0_32, %c0_33] : memref<8x8x128xf32, #tpu.memory_space<vmem>>, vector<1x8x128xf32>
    %43 = vector.shape_cast %42 : vector<1x8x128xf32> to vector<8x128xf32>
    %44 = vector.shape_cast %41 : vector<8x128xf32> to vector<1x8x128xf32>
    tpu.vector_store %arg11[%c4_31, %c0_32, %c0_33], %44 {strides = array<i32>} : memref<8x8x128xf32, #tpu.memory_space<vmem>>, vector<1x8x128xf32>,
    %c5 = arith.constant 5 : index
    %c0_34 = arith.constant 0 : index
    %c0_35 = arith.constant 0 : index
    %45 = vector.load %arg2[%c5, %c0_34, %c0_35] : memref<8x8x128xbf16, #tpu.memory_space<vmem>>, vector<1x8x128xbf16>
    %46 = vector.shape_cast %45 : vector<1x8x128xbf16> to vector<8x128xbf16>
    %cst_36 = arith.constant dense<0.000000e+00> : vector<8x128xf32>
    %47 = tpu.matmul %46, %3, %cst_36 {dimension_numbers = #tpu.dot_dimension_numbers<[1], [0], [0], [1], [0, 0, 1, 1], [], []>} : vector<8x128xbf16>, vector<128x128xbf16>, vector<8x128xf32> -> vector<8x128xf32>
    %48 = vector.broadcast %4 : vector<1x128xf32> to vector<8x128xf32>
    %49 = arith.addf %47, %48 : vector<8x128xf32>
    %c5_37 = arith.constant 5 : index
    %c0_38 = arith.constant 0 : index
    %c0_39 = arith.constant 0 : index
    %50 = vector.load %arg11[%c5_37, %c0_38, %c0_39] : memref<8x8x128xf32, #tpu.memory_space<vmem>>, vector<1x8x128xf32>
    %51 = vector.shape_cast %50 : vector<1x8x128xf32> to vector<8x128xf32>
    %52 = vector.shape_cast %49 : vector<8x128xf32> to vector<1x8x128xf32>
    tpu.vector_store %arg11[%c5_37, %c0_38, %c0_39], %52 {strides = array<i32>} : memref<8x8x128xf32, #tpu.memory_space<vmem>>, vector<1x8x128xf32>,
    %c6 = arith.constant 6 : index
    %c0_40 = arith.constant 0 : index
    %c0_41 = arith.constant 0 : index
    %53 = vector.load %arg2[%c6, %c0_40, %c0_41] : memref<8x8x128xbf16, #tpu.memory_space<vmem>>, vector<1x8x128xbf16>
    %54 = vector.shape_cast %53 : vector<1x8x128xbf16> to vector<8x128xbf16>
    %cst_42 = arith.constant dense<0.000000e+00> : vector<8x128xf32>
    %55 = tpu.matmul %54, %3, %cst_42 {dimension_numbers = #tpu.dot_dimension_numbers<[1], [0], [0], [1], [0, 0, 1, 1], [], []>} : vector<8x128xbf16>, vector<128x128xbf16>, vector<8x128xf32> -> vector<8x128xf32>
    %56 = vector.broadcast %4 : vector<1x128xf32> to vector<8x128xf32>
    %57 = arith.addf %55, %56 : vector<8x128xf32>
    %c6_43 = arith.constant 6 : index
    %c0_44 = arith.constant 0 : index
    %c0_45 = arith.constant 0 : index
    %58 = vector.load %arg11[%c6_43, %c0_44, %c0_45] : memref<8x8x128xf32, #tpu.memory_space<vmem>>, vector<1x8x128xf32>
    %59 = vector.shape_cast %58 : vector<1x8x128xf32> to vector<8x128xf32>
    %60 = vector.shape_cast %57 : vector<8x128xf32> to vector<1x8x128xf32>
    tpu.vector_store %arg11[%c6_43, %c0_44, %c0_45], %60 {strides = array<i32>} : memref<8x8x128xf32, #tpu.memory_space<vmem>>, vector<1x8x128xf32>,
    %c7 = arith.constant 7 : index
    %c0_46 = arith.constant 0 : index
    %c0_47 = arith.constant 0 : index
    %61 = vector.load %arg2[%c7, %c0_46, %c0_47] : memref<8x8x128xbf16, #tpu.memory_space<vmem>>, vector<1x8x128xbf16>
    %62 = vector.shape_cast %61 : vector<1x8x128xbf16> to vector<8x128xbf16>
    %cst_48 = arith.constant dense<0.000000e+00> : vector<8x128xf32>
    %63 = tpu.matmul %62, %3, %cst_48 {dimension_numbers = #tpu.dot_dimension_numbers<[1], [0], [0], [1], [0, 0, 1, 1], [], []>} : vector<8x128xbf16>, vector<128x128xbf16>, vector<8x128xf32> -> vector<8x128xf32>
    %64 = vector.broadcast %4 : vector<1x128xf32> to vector<8x128xf32>
    %65 = arith.addf %63, %64 : vector<8x128xf32>
    %c7_49 = arith.constant 7 : index
    %c0_50 = arith.constant 0 : index
    %c0_51 = arith.constant 0 : index
    %66 = vector.load %arg11[%c7_49, %c0_50, %c0_51] : memref<8x8x128xf32, #tpu.memory_space<vmem>>, vector<1x8x128xf32>
    %67 = vector.shape_cast %66 : vector<1x8x128xf32> to vector<8x128xf32>
    %68 = vector.shape_cast %65 : vector<8x128xf32> to vector<1x8x128xf32>
    tpu.vector_store %arg11[%c7_49, %c0_50, %c0_51], %68 {strides = array<i32>} : memref<8x8x128xf32, #tpu.memory_space<vmem>>, vector<1x8x128xf32>,
    %c0_52 = arith.constant 0 : index
    %c0_53 = arith.constant 0 : index
    %69 = vector.load %arg5[%c0_52, %c0_53] : memref<32x128xbf16, #tpu.memory_space<vmem>>, vector<32x128xbf16>
    %c0_54 = arith.constant 0 : index
    %c0_55 = arith.constant 0 : index
    %70 = vector.load %arg12[%c0_54, %c0_55] : memref<8x32xf32, #tpu.memory_space<vmem>>, vector<8x32xf32>
    %c0_56 = arith.constant 0 : index
    %c0_57 = arith.constant 0 : index
    %71 = vector.load %arg13[%c0_56, %c0_57] : memref<8x32xf32, #tpu.memory_space<vmem>>, vector<8x32xf32>
    %c0_58 = arith.constant 0 : index
    %c0_59 = arith.constant 0 : index
    %c0_60 = arith.constant 0 : index
    %72 = vector.load %arg11[%c0_58, %c0_59, %c0_60] : memref<8x8x128xf32, #tpu.memory_space<vmem>>, vector<1x8x128xf32>
    %73 = vector.shape_cast %72 : vector<1x8x128xf32> to vector<8x128xf32>
    %74 = arith.truncf %70 : vector<8x32xf32> to vector<8x32xbf16>
    %cst_61 = arith.constant dense<0.000000e+00> : vector<8x128xf32>
    %75 = tpu.matmul %74, %69, %cst_61 {dimension_numbers = #tpu.dot_dimension_numbers<[1], [0], [0], [1], [0, 0, 1, 1], [], []>} : vector<8x32xbf16>, vector<32x128xbf16>, vector<8x128xf32> -> vector<8x128xf32>
    %76 = arith.addf %73, %75 : vector<8x128xf32>
    %77 = vector.extract_strided_slice %76 {offsets = [0, 0], sizes = [8, 96], strides = [1, 1]} : vector<8x128xf32> to vector<8x96xf32>
    %78 = arith.negf %77 : vector<8x96xf32>
    %79 = math.exp %78 : vector<8x96xf32>
    %cst_62 = arith.constant 1.000000e+00 : f32
    %80 = vector.broadcast %cst_62 : f32 to vector<8x96xf32>
    %81 = arith.addf %80, %79 : vector<8x96xf32>
    %82 = arith.divf %80, %81 : vector<8x96xf32>
    %83 = vector.extract_strided_slice %76 {offsets = [0, 96], sizes = [8, 32], strides = [1, 1]} : vector<8x128xf32> to vector<8x32xf32>
    %84 = math.tanh %83 : vector<8x32xf32>
    %85 = vector.extract_strided_slice %82 {offsets = [0, 0], sizes = [8, 32], strides = [1, 1]} : vector<8x96xf32> to vector<8x32xf32>
    %86 = vector.extract_strided_slice %82 {offsets = [0, 32], sizes = [8, 32], strides = [1, 1]} : vector<8x96xf32> to vector<8x32xf32>
    %87 = vector.extract_strided_slice %82 {offsets = [0, 64], sizes = [8, 32], strides = [1, 1]} : vector<8x96xf32> to vector<8x32xf32>
    %88 = arith.mulf %86, %71 : vector<8x32xf32>
    %89 = arith.mulf %85, %84 : vector<8x32xf32>
    %90 = arith.addf %88, %89 : vector<8x32xf32>
    %91 = math.tanh %90 : vector<8x32xf32>
    %92 = arith.mulf %87, %91 : vector<8x32xf32>
    %93 = arith.truncf %92 : vector<8x32xf32> to vector<8x32xbf16>
    %c0_63 = arith.constant 0 : index
    %c0_64 = arith.constant 0 : index
    %c0_65 = arith.constant 0 : index
    %94 = vector.load %arg8[%c0_63, %c0_64, %c0_65] : memref<8x8x32xbf16, #tpu.memory_space<vmem>>, vector<1x8x32xbf16>
    %95 = vector.shape_cast %94 : vector<1x8x32xbf16> to vector<8x32xbf16>
    %96 = vector.shape_cast %93 : vector<8x32xbf16> to vector<1x8x32xbf16>
    tpu.vector_store %arg8[%c0_63, %c0_64, %c0_65], %96 {strides = array<i32>} : memref<8x8x32xbf16, #tpu.memory_space<vmem>>, vector<1x8x32xbf16>,
    %c1_66 = arith.constant 1 : index
    %c0_67 = arith.constant 0 : index
    %c0_68 = arith.constant 0 : index
    %97 = vector.load %arg11[%c1_66, %c0_67, %c0_68] : memref<8x8x128xf32, #tpu.memory_space<vmem>>, vector<1x8x128xf32>
    %98 = vector.shape_cast %97 : vector<1x8x128xf32> to vector<8x128xf32>
    %99 = arith.truncf %92 : vector<8x32xf32> to vector<8x32xbf16>
    %cst_69 = arith.constant dense<0.000000e+00> : vector<8x128xf32>
    %100 = tpu.matmul %99, %69, %cst_69 {dimension_numbers = #tpu.dot_dimension_numbers<[1], [0], [0], [1], [0, 0, 1, 1], [], []>} : vector<8x32xbf16>, vector<32x128xbf16>, vector<8x128xf32> -> vector<8x128xf32>
    %101 = arith.addf %98, %100 : vector<8x128xf32>
    %102 = vector.extract_strided_slice %101 {offsets = [0, 0], sizes = [8, 96], strides = [1, 1]} : vector<8x128xf32> to vector<8x96xf32>
    %103 = arith.negf %102 : vector<8x96xf32>
    %104 = math.exp %103 : vector<8x96xf32>
    %cst_70 = arith.constant 1.000000e+00 : f32
    %105 = vector.broadcast %cst_70 : f32 to vector<8x96xf32>
    %106 = arith.addf %105, %104 : vector<8x96xf32>
    %107 = arith.divf %105, %106 : vector<8x96xf32>
    %108 = vector.extract_strided_slice %101 {offsets = [0, 96], sizes = [8, 32], strides = [1, 1]} : vector<8x128xf32> to vector<8x32xf32>
    %109 = math.tanh %108 : vector<8x32xf32>
    %110 = vector.extract_strided_slice %107 {offsets = [0, 0], sizes = [8, 32], strides = [1, 1]} : vector<8x96xf32> to vector<8x32xf32>
    %111 = vector.extract_strided_slice %107 {offsets = [0, 32], sizes = [8, 32], strides = [1, 1]} : vector<8x96xf32> to vector<8x32xf32>
    %112 = vector.extract_strided_slice %107 {offsets = [0, 64], sizes = [8, 32], strides = [1, 1]} : vector<8x96xf32> to vector<8x32xf32>
    %113 = arith.mulf %111, %90 : vector<8x32xf32>
    %114 = arith.mulf %110, %109 : vector<8x32xf32>
    %115 = arith.addf %113, %114 : vector<8x32xf32>
    %116 = math.tanh %115 : vector<8x32xf32>
    %117 = arith.mulf %112, %116 : vector<8x32xf32>
    %118 = arith.truncf %117 : vector<8x32xf32> to vector<8x32xbf16>
    %c1_71 = arith.constant 1 : index
    %c0_72 = arith.constant 0 : index
    %c0_73 = arith.constant 0 : index
    %119 = vector.load %arg8[%c1_71, %c0_72, %c0_73] : memref<8x8x32xbf16, #tpu.memory_space<vmem>>, vector<1x8x32xbf16>
    %120 = vector.shape_cast %119 : vector<1x8x32xbf16> to vector<8x32xbf16>
    %121 = vector.shape_cast %118 : vector<8x32xbf16> to vector<1x8x32xbf16>
    tpu.vector_store %arg8[%c1_71, %c0_72, %c0_73], %121 {strides = array<i32>} : memref<8x8x32xbf16, #tpu.memory_space<vmem>>, vector<1x8x32xbf16>,
    %c2_74 = arith.constant 2 : index
    %c0_75 = arith.constant 0 : index
    %c0_76 = arith.constant 0 : index
    %122 = vector.load %arg11[%c2_74, %c0_75, %c0_76] : memref<8x8x128xf32, #tpu.memory_space<vmem>>, vector<1x8x128xf32>
    %123 = vector.shape_cast %122 : vector<1x8x128xf32> to vector<8x128xf32>
    %124 = arith.truncf %117 : vector<8x32xf32> to vector<8x32xbf16>
    %cst_77 = arith.constant dense<0.000000e+00> : vector<8x128xf32>
    %125 = tpu.matmul %124, %69, %cst_77 {dimension_numbers = #tpu.dot_dimension_numbers<[1], [0], [0], [1], [0, 0, 1, 1], [], []>} : vector<8x32xbf16>, vector<32x128xbf16>, vector<8x128xf32> -> vector<8x128xf32>
    %126 = arith.addf %123, %125 : vector<8x128xf32>
    %127 = vector.extract_strided_slice %126 {offsets = [0, 0], sizes = [8, 96], strides = [1, 1]} : vector<8x128xf32> to vector<8x96xf32>
    %128 = arith.negf %127 : vector<8x96xf32>
    %129 = math.exp %128 : vector<8x96xf32>
    %cst_78 = arith.constant 1.000000e+00 : f32
    %130 = vector.broadcast %cst_78 : f32 to vector<8x96xf32>
    %131 = arith.addf %130, %129 : vector<8x96xf32>
    %132 = arith.divf %130, %131 : vector<8x96xf32>
    %133 = vector.extract_strided_slice %126 {offsets = [0, 96], sizes = [8, 32], strides = [1, 1]} : vector<8x128xf32> to vector<8x32xf32>
    %134 = math.tanh %133 : vector<8x32xf32>
    %135 = vector.extract_strided_slice %132 {offsets = [0, 0], sizes = [8, 32], strides = [1, 1]} : vector<8x96xf32> to vector<8x32xf32>
    %136 = vector.extract_strided_slice %132 {offsets = [0, 32], sizes = [8, 32], strides = [1, 1]} : vector<8x96xf32> to vector<8x32xf32>
    %137 = vector.extract_strided_slice %132 {offsets = [0, 64], sizes = [8, 32], strides = [1, 1]} : vector<8x96xf32> to vector<8x32xf32>
    %138 = arith.mulf %136, %115 : vector<8x32xf32>
    %139 = arith.mulf %135, %134 : vector<8x32xf32>
    %140 = arith.addf %138, %139 : vector<8x32xf32>
    %141 = math.tanh %140 : vector<8x32xf32>
    %142 = arith.mulf %137, %141 : vector<8x32xf32>
    %143 = arith.truncf %142 : vector<8x32xf32> to vector<8x32xbf16>
    %c2_79 = arith.constant 2 : index
    %c0_80 = arith.constant 0 : index
    %c0_81 = arith.constant 0 : index
    %144 = vector.load %arg8[%c2_79, %c0_80, %c0_81] : memref<8x8x32xbf16, #tpu.memory_space<vmem>>, vector<1x8x32xbf16>
    %145 = vector.shape_cast %144 : vector<1x8x32xbf16> to vector<8x32xbf16>
    %146 = vector.shape_cast %143 : vector<8x32xbf16> to vector<1x8x32xbf16>
    tpu.vector_store %arg8[%c2_79, %c0_80, %c0_81], %146 {strides = array<i32>} : memref<8x8x32xbf16, #tpu.memory_space<vmem>>, vector<1x8x32xbf16>,
    %c3_82 = arith.constant 3 : index
    %c0_83 = arith.constant 0 : index
    %c0_84 = arith.constant 0 : index
    %147 = vector.load %arg11[%c3_82, %c0_83, %c0_84] : memref<8x8x128xf32, #tpu.memory_space<vmem>>, vector<1x8x128xf32>
    %148 = vector.shape_cast %147 : vector<1x8x128xf32> to vector<8x128xf32>
    %149 = arith.truncf %142 : vector<8x32xf32> to vector<8x32xbf16>
    %cst_85 = arith.constant dense<0.000000e+00> : vector<8x128xf32>
    %150 = tpu.matmul %149, %69, %cst_85 {dimension_numbers = #tpu.dot_dimension_numbers<[1], [0], [0], [1], [0, 0, 1, 1], [], []>} : vector<8x32xbf16>, vector<32x128xbf16>, vector<8x128xf32> -> vector<8x128xf32>
    %151 = arith.addf %148, %150 : vector<8x128xf32>
    %152 = vector.extract_strided_slice %151 {offsets = [0, 0], sizes = [8, 96], strides = [1, 1]} : vector<8x128xf32> to vector<8x96xf32>
    %153 = arith.negf %152 : vector<8x96xf32>
    %154 = math.exp %153 : vector<8x96xf32>
    %cst_86 = arith.constant 1.000000e+00 : f32
    %155 = vector.broadcast %cst_86 : f32 to vector<8x96xf32>
    %156 = arith.addf %155, %154 : vector<8x96xf32>
    %157 = arith.divf %155, %156 : vector<8x96xf32>
    %158 = vector.extract_strided_slice %151 {offsets = [0, 96], sizes = [8, 32], strides = [1, 1]} : vector<8x128xf32> to vector<8x32xf32>
    %159 = math.tanh %158 : vector<8x32xf32>
    %160 = vector.extract_strided_slice %157 {offsets = [0, 0], sizes = [8, 32], strides = [1, 1]} : vector<8x96xf32> to vector<8x32xf32>
    %161 = vector.extract_strided_slice %157 {offsets = [0, 32], sizes = [8, 32], strides = [1, 1]} : vector<8x96xf32> to vector<8x32xf32>
    %162 = vector.extract_strided_slice %157 {offsets = [0, 64], sizes = [8, 32], strides = [1, 1]} : vector<8x96xf32> to vector<8x32xf32>
    %163 = arith.mulf %161, %140 : vector<8x32xf32>
    %164 = arith.mulf %160, %159 : vector<8x32xf32>
    %165 = arith.addf %163, %164 : vector<8x32xf32>
    %166 = math.tanh %165 : vector<8x32xf32>
    %167 = arith.mulf %162, %166 : vector<8x32xf32>
    %168 = arith.truncf %167 : vector<8x32xf32> to vector<8x32xbf16>
    %c3_87 = arith.constant 3 : index
    %c0_88 = arith.constant 0 : index
    %c0_89 = arith.constant 0 : index
    %169 = vector.load %arg8[%c3_87, %c0_88, %c0_89] : memref<8x8x32xbf16, #tpu.memory_space<vmem>>, vector<1x8x32xbf16>
    %170 = vector.shape_cast %169 : vector<1x8x32xbf16> to vector<8x32xbf16>
    %171 = vector.shape_cast %168 : vector<8x32xbf16> to vector<1x8x32xbf16>
    tpu.vector_store %arg8[%c3_87, %c0_88, %c0_89], %171 {strides = array<i32>} : memref<8x8x32xbf16, #tpu.memory_space<vmem>>, vector<1x8x32xbf16>,
    %c4_90 = arith.constant 4 : index
    %c0_91 = arith.constant 0 : index
    %c0_92 = arith.constant 0 : index
    %172 = vector.load %arg11[%c4_90, %c0_91, %c0_92] : memref<8x8x128xf32, #tpu.memory_space<vmem>>, vector<1x8x128xf32>
    %173 = vector.shape_cast %172 : vector<1x8x128xf32> to vector<8x128xf32>
    %174 = arith.truncf %167 : vector<8x32xf32> to vector<8x32xbf16>
    %cst_93 = arith.constant dense<0.000000e+00> : vector<8x128xf32>
    %175 = tpu.matmul %174, %69, %cst_93 {dimension_numbers = #tpu.dot_dimension_numbers<[1], [0], [0], [1], [0, 0, 1, 1], [], []>} : vector<8x32xbf16>, vector<32x128xbf16>, vector<8x128xf32> -> vector<8x128xf32>
    %176 = arith.addf %173, %175 : vector<8x128xf32>
    %177 = vector.extract_strided_slice %176 {offsets = [0, 0], sizes = [8, 96], strides = [1, 1]} : vector<8x128xf32> to vector<8x96xf32>
    %178 = arith.negf %177 : vector<8x96xf32>
    %179 = math.exp %178 : vector<8x96xf32>
    %cst_94 = arith.constant 1.000000e+00 : f32
    %180 = vector.broadcast %cst_94 : f32 to vector<8x96xf32>
    %181 = arith.addf %180, %179 : vector<8x96xf32>
    %182 = arith.divf %180, %181 : vector<8x96xf32>
    %183 = vector.extract_strided_slice %176 {offsets = [0, 96], sizes = [8, 32], strides = [1, 1]} : vector<8x128xf32> to vector<8x32xf32>
    %184 = math.tanh %183 : vector<8x32xf32>
    %185 = vector.extract_strided_slice %182 {offsets = [0, 0], sizes = [8, 32], strides = [1, 1]} : vector<8x96xf32> to vector<8x32xf32>
    %186 = vector.extract_strided_slice %182 {offsets = [0, 32], sizes = [8, 32], strides = [1, 1]} : vector<8x96xf32> to vector<8x32xf32>
    %187 = vector.extract_strided_slice %182 {offsets = [0, 64], sizes = [8, 32], strides = [1, 1]} : vector<8x96xf32> to vector<8x32xf32>
    %188 = arith.mulf %186, %165 : vector<8x32xf32>
    %189 = arith.mulf %185, %184 : vector<8x32xf32>
    %190 = arith.addf %188, %189 : vector<8x32xf32>
    %191 = math.tanh %190 : vector<8x32xf32>
    %192 = arith.mulf %187, %191 : vector<8x32xf32>
    %193 = arith.truncf %192 : vector<8x32xf32> to vector<8x32xbf16>
    %c4_95 = arith.constant 4 : index
    %c0_96 = arith.constant 0 : index
    %c0_97 = arith.constant 0 : index
    %194 = vector.load %arg8[%c4_95, %c0_96, %c0_97] : memref<8x8x32xbf16, #tpu.memory_space<vmem>>, vector<1x8x32xbf16>
    %195 = vector.shape_cast %194 : vector<1x8x32xbf16> to vector<8x32xbf16>
    %196 = vector.shape_cast %193 : vector<8x32xbf16> to vector<1x8x32xbf16>
    tpu.vector_store %arg8[%c4_95, %c0_96, %c0_97], %196 {strides = array<i32>} : memref<8x8x32xbf16, #tpu.memory_space<vmem>>, vector<1x8x32xbf16>,
    %c5_98 = arith.constant 5 : index
    %c0_99 = arith.constant 0 : index
    %c0_100 = arith.constant 0 : index
    %197 = vector.load %arg11[%c5_98, %c0_99, %c0_100] : memref<8x8x128xf32, #tpu.memory_space<vmem>>, vector<1x8x128xf32>
    %198 = vector.shape_cast %197 : vector<1x8x128xf32> to vector<8x128xf32>
    %199 = arith.truncf %192 : vector<8x32xf32> to vector<8x32xbf16>
    %cst_101 = arith.constant dense<0.000000e+00> : vector<8x128xf32>
    %200 = tpu.matmul %199, %69, %cst_101 {dimension_numbers = #tpu.dot_dimension_numbers<[1], [0], [0], [1], [0, 0, 1, 1], [], []>} : vector<8x32xbf16>, vector<32x128xbf16>, vector<8x128xf32> -> vector<8x128xf32>
    %201 = arith.addf %198, %200 : vector<8x128xf32>
    %202 = vector.extract_strided_slice %201 {offsets = [0, 0], sizes = [8, 96], strides = [1, 1]} : vector<8x128xf32> to vector<8x96xf32>
    %203 = arith.negf %202 : vector<8x96xf32>
    %204 = math.exp %203 : vector<8x96xf32>
    %cst_102 = arith.constant 1.000000e+00 : f32
    %205 = vector.broadcast %cst_102 : f32 to vector<8x96xf32>
    %206 = arith.addf %205, %204 : vector<8x96xf32>
    %207 = arith.divf %205, %206 : vector<8x96xf32>
    %208 = vector.extract_strided_slice %201 {offsets = [0, 96], sizes = [8, 32], strides = [1, 1]} : vector<8x128xf32> to vector<8x32xf32>
    %209 = math.tanh %208 : vector<8x32xf32>
    %210 = vector.extract_strided_slice %207 {offsets = [0, 0], sizes = [8, 32], strides = [1, 1]} : vector<8x96xf32> to vector<8x32xf32>
    %211 = vector.extract_strided_slice %207 {offsets = [0, 32], sizes = [8, 32], strides = [1, 1]} : vector<8x96xf32> to vector<8x32xf32>
    %212 = vector.extract_strided_slice %207 {offsets = [0, 64], sizes = [8, 32], strides = [1, 1]} : vector<8x96xf32> to vector<8x32xf32>
    %213 = arith.mulf %211, %190 : vector<8x32xf32>
    %214 = arith.mulf %210, %209 : vector<8x32xf32>
    %215 = arith.addf %213, %214 : vector<8x32xf32>
    %216 = math.tanh %215 : vector<8x32xf32>
    %217 = arith.mulf %212, %216 : vector<8x32xf32>
    %218 = arith.truncf %217 : vector<8x32xf32> to vector<8x32xbf16>
    %c5_103 = arith.constant 5 : index
    %c0_104 = arith.constant 0 : index
    %c0_105 = arith.constant 0 : index
    %219 = vector.load %arg8[%c5_103, %c0_104, %c0_105] : memref<8x8x32xbf16, #tpu.memory_space<vmem>>, vector<1x8x32xbf16>
    %220 = vector.shape_cast %219 : vector<1x8x32xbf16> to vector<8x32xbf16>
    %221 = vector.shape_cast %218 : vector<8x32xbf16> to vector<1x8x32xbf16>
    tpu.vector_store %arg8[%c5_103, %c0_104, %c0_105], %221 {strides = array<i32>} : memref<8x8x32xbf16, #tpu.memory_space<vmem>>, vector<1x8x32xbf16>,
    %c6_106 = arith.constant 6 : index
    %c0_107 = arith.constant 0 : index
    %c0_108 = arith.constant 0 : index
    %222 = vector.load %arg11[%c6_106, %c0_107, %c0_108] : memref<8x8x128xf32, #tpu.memory_space<vmem>>, vector<1x8x128xf32>
    %223 = vector.shape_cast %222 : vector<1x8x128xf32> to vector<8x128xf32>
    %224 = arith.truncf %217 : vector<8x32xf32> to vector<8x32xbf16>
    %cst_109 = arith.constant dense<0.000000e+00> : vector<8x128xf32>
    %225 = tpu.matmul %224, %69, %cst_109 {dimension_numbers = #tpu.dot_dimension_numbers<[1], [0], [0], [1], [0, 0, 1, 1], [], []>} : vector<8x32xbf16>, vector<32x128xbf16>, vector<8x128xf32> -> vector<8x128xf32>
    %226 = arith.addf %223, %225 : vector<8x128xf32>
    %227 = vector.extract_strided_slice %226 {offsets = [0, 0], sizes = [8, 96], strides = [1, 1]} : vector<8x128xf32> to vector<8x96xf32>
    %228 = arith.negf %227 : vector<8x96xf32>
    %229 = math.exp %228 : vector<8x96xf32>
    %cst_110 = arith.constant 1.000000e+00 : f32
    %230 = vector.broadcast %cst_110 : f32 to vector<8x96xf32>
    %231 = arith.addf %230, %229 : vector<8x96xf32>
    %232 = arith.divf %230, %231 : vector<8x96xf32>
    %233 = vector.extract_strided_slice %226 {offsets = [0, 96], sizes = [8, 32], strides = [1, 1]} : vector<8x128xf32> to vector<8x32xf32>
    %234 = math.tanh %233 : vector<8x32xf32>
    %235 = vector.extract_strided_slice %232 {offsets = [0, 0], sizes = [8, 32], strides = [1, 1]} : vector<8x96xf32> to vector<8x32xf32>
    %236 = vector.extract_strided_slice %232 {offsets = [0, 32], sizes = [8, 32], strides = [1, 1]} : vector<8x96xf32> to vector<8x32xf32>
    %237 = vector.extract_strided_slice %232 {offsets = [0, 64], sizes = [8, 32], strides = [1, 1]} : vector<8x96xf32> to vector<8x32xf32>
    %238 = arith.mulf %236, %215 : vector<8x32xf32>
    %239 = arith.mulf %235, %234 : vector<8x32xf32>
    %240 = arith.addf %238, %239 : vector<8x32xf32>
    %241 = math.tanh %240 : vector<8x32xf32>
    %242 = arith.mulf %237, %241 : vector<8x32xf32>
    %243 = arith.truncf %242 : vector<8x32xf32> to vector<8x32xbf16>
    %c6_111 = arith.constant 6 : index
    %c0_112 = arith.constant 0 : index
    %c0_113 = arith.constant 0 : index
    %244 = vector.load %arg8[%c6_111, %c0_112, %c0_113] : memref<8x8x32xbf16, #tpu.memory_space<vmem>>, vector<1x8x32xbf16>
    %245 = vector.shape_cast %244 : vector<1x8x32xbf16> to vector<8x32xbf16>
    %246 = vector.shape_cast %243 : vector<8x32xbf16> to vector<1x8x32xbf16>
    tpu.vector_store %arg8[%c6_111, %c0_112, %c0_113], %246 {strides = array<i32>} : memref<8x8x32xbf16, #tpu.memory_space<vmem>>, vector<1x8x32xbf16>,
    %c7_114 = arith.constant 7 : index
    %c0_115 = arith.constant 0 : index
    %c0_116 = arith.constant 0 : index
    %247 = vector.load %arg11[%c7_114, %c0_115, %c0_116] : memref<8x8x128xf32, #tpu.memory_space<vmem>>, vector<1x8x128xf32>
    %248 = vector.shape_cast %247 : vector<1x8x128xf32> to vector<8x128xf32>
    %249 = arith.truncf %242 : vector<8x32xf32> to vector<8x32xbf16>
    %cst_117 = arith.constant dense<0.000000e+00> : vector<8x128xf32>
    %250 = tpu.matmul %249, %69, %cst_117 {dimension_numbers = #tpu.dot_dimension_numbers<[1], [0], [0], [1], [0, 0, 1, 1], [], []>} : vector<8x32xbf16>, vector<32x128xbf16>, vector<8x128xf32> -> vector<8x128xf32>
    %251 = arith.addf %248, %250 : vector<8x128xf32>
    %252 = vector.extract_strided_slice %251 {offsets = [0, 0], sizes = [8, 96], strides = [1, 1]} : vector<8x128xf32> to vector<8x96xf32>
    %253 = arith.negf %252 : vector<8x96xf32>
    %254 = math.exp %253 : vector<8x96xf32>
    %cst_118 = arith.constant 1.000000e+00 : f32
    %255 = vector.broadcast %cst_118 : f32 to vector<8x96xf32>
    %256 = arith.addf %255, %254 : vector<8x96xf32>
    %257 = arith.divf %255, %256 : vector<8x96xf32>
    %258 = vector.extract_strided_slice %251 {offsets = [0, 96], sizes = [8, 32], strides = [1, 1]} : vector<8x128xf32> to vector<8x32xf32>
    %259 = math.tanh %258 : vector<8x32xf32>
    %260 = vector.extract_strided_slice %257 {offsets = [0, 0], sizes = [8, 32], strides = [1, 1]} : vector<8x96xf32> to vector<8x32xf32>
    %261 = vector.extract_strided_slice %257 {offsets = [0, 32], sizes = [8, 32], strides = [1, 1]} : vector<8x96xf32> to vector<8x32xf32>
    %262 = vector.extract_strided_slice %257 {offsets = [0, 64], sizes = [8, 32], strides = [1, 1]} : vector<8x96xf32> to vector<8x32xf32>
    %263 = arith.mulf %261, %240 : vector<8x32xf32>
    %264 = arith.mulf %260, %259 : vector<8x32xf32>
    %265 = arith.addf %263, %264 : vector<8x32xf32>
    %266 = math.tanh %265 : vector<8x32xf32>
    %267 = arith.mulf %262, %266 : vector<8x32xf32>
    %268 = arith.truncf %267 : vector<8x32xf32> to vector<8x32xbf16>
    %c7_119 = arith.constant 7 : index
    %c0_120 = arith.constant 0 : index
    %c0_121 = arith.constant 0 : index
    %269 = vector.load %arg8[%c7_119, %c0_120, %c0_121] : memref<8x8x32xbf16, #tpu.memory_space<vmem>>, vector<1x8x32xbf16>
    %270 = vector.shape_cast %269 : vector<1x8x32xbf16> to vector<8x32xbf16>
    %271 = vector.shape_cast %268 : vector<8x32xbf16> to vector<1x8x32xbf16>
    tpu.vector_store %arg8[%c7_119, %c0_120, %c0_121], %271 {strides = array<i32>} : memref<8x8x32xbf16, #tpu.memory_space<vmem>>, vector<1x8x32xbf16>,
    %c0_122 = arith.constant 0 : index
    %c0_123 = arith.constant 0 : index
    %272 = vector.load %arg12[%c0_122, %c0_123] : memref<8x32xf32, #tpu.memory_space<vmem>>, vector<8x32xf32>
    tpu.vector_store %arg12[%c0_122, %c0_123], %267 {strides = array<i32>} : memref<8x32xf32, #tpu.memory_space<vmem>>, vector<8x32xf32>,
    %c0_124 = arith.constant 0 : index
    %c0_125 = arith.constant 0 : index
    %273 = vector.load %arg13[%c0_124, %c0_125] : memref<8x32xf32, #tpu.memory_space<vmem>>, vector<8x32xf32>
    tpu.vector_store %arg13[%c0_124, %c0_125], %265 {strides = array<i32>} : memref<8x32xf32, #tpu.memory_space<vmem>>, vector<8x32xf32>,
    %c0_i32_126 = arith.constant 0 : i32
    %274 = arith.cmpi eq, %arg1, %c0_i32_126 : i32
    %275 = arith.extui %274 : i1 to i32
    %c0_i32_127 = arith.constant 0 : i32
    %276 = arith.cmpi ne, %275, %c0_i32_127 : i32
    scf.if %276 {
      %c0_128 = arith.constant 0 : index
      %c0_129 = arith.constant 0 : index
      %277 = vector.load %arg9[%c0_128, %c0_129] : memref<8x32xf32, #tpu.memory_space<vmem>>, vector<8x32xf32>
      tpu.vector_store %arg9[%c0_128, %c0_129], %267 {strides = array<i32>} : memref<8x32xf32, #tpu.memory_space<vmem>>, vector<8x32xf32>,
      %c0_130 = arith.constant 0 : index
      %c0_131 = arith.constant 0 : index
      %278 = vector.load %arg10[%c0_130, %c0_131] : memref<8x32xf32, #tpu.memory_space<vmem>>, vector<8x32xf32>
      tpu.vector_store %arg10[%c0_130, %c0_131], %265 {strides = array<i32>} : memref<8x32xf32, #tpu.memory_space<vmem>>, vector<8x32xf32>,
    } else {
    }
    return
  }
  func.func @transform_0(%arg0: i32, %arg1: i32) -> (i32, i32, i32) {
    %c0_i32 = arith.constant 0 : i32
    %c0_i32_0 = arith.constant 0 : i32
    return %arg1, %arg0, %c0_i32 : i32, i32, i32
  }
  func.func @transform_1(%arg0: i32, %arg1: i32) -> (i32, i32) {
    %c0_i32 = arith.constant 0 : i32
    %c0_i32_0 = arith.constant 0 : i32
    %c0_i32_1 = arith.constant 0 : i32
    return %c0_i32, %c0_i32_0 : i32, i32
  }
  func.func @transform_2(%arg0: i32, %arg1: i32) -> (i32, i32) {
    %c0_i32 = arith.constant 0 : i32
    %c0_i32_0 = arith.constant 0 : i32
    %c0_i32_1 = arith.constant 0 : i32
    return %c0_i32, %c0_i32_0 : i32, i32
  }
  func.func @transform_3(%arg0: i32, %arg1: i32) -> (i32, i32) {
    %c0_i32 = arith.constant 0 : i32
    %c0_i32_0 = arith.constant 0 : i32
    %c0_i32_1 = arith.constant 0 : i32
    return %c0_i32, %c0_i32_0 : i32, i32
  }
  func.func @transform_4(%arg0: i32, %arg1: i32) -> (i32, i32) {
    %c0_i32 = arith.constant 0 : i32
    %c0_i32_0 = arith.constant 0 : i32
    return %arg0, %c0_i32 : i32, i32
  }
  func.func @transform_5(%arg0: i32, %arg1: i32) -> (i32, i32) {
    %c0_i32 = arith.constant 0 : i32
    %c0_i32_0 = arith.constant 0 : i32
    return %arg0, %c0_i32 : i32, i32
  }
  func.func @transform_6(%arg0: i32, %arg1: i32) -> (i32, i32, i32) {
    %c0_i32 = arith.constant 0 : i32
    %c0_i32_0 = arith.constant 0 : i32
    return %arg1, %arg0, %c0_i32 : i32, i32, i32
  }
  func.func @transform_7(%arg0: i32, %arg1: i32) -> (i32, i32) {
    %c0_i32 = arith.constant 0 : i32
    %c0_i32_0 = arith.constant 0 : i32
    return %arg0, %c0_i32 : i32, i32
  }
  func.func @transform_8(%arg0: i32, %arg1: i32) -> (i32, i32) {
    %c0_i32 = arith.constant 0 : i32
    %c0_i32_0 = arith.constant 0 : i32
    return %arg0, %c0_i32 : i32, i32
  }
}

</mosaic_0001>

<llo_original>
// kernel: tpu_custom_call.1
$region0: #{tpu_custom_call.1}
  #allocation0 [shape = 'u32[]', space=smem, size = 0x4, offset = 0x4, fixed_abs, tag = 'smem constant byte address 0x4 - core index']
  #allocation1 [shape = 'u32[144,128]{1,0:T(1,128)}', space=vmem, size = 0x12000, scoped, tag = 'internal scratch']
  #allocation2 [shape = 'f32[8,8,128]{2,1,0:T(8,128)}', space=vmem, size = 0x8000, scoped, tag = 'scratch operand']
  #allocation3 [shape = 'f32[8,32]{1,0:T(8,128)}', space=vmem, size = 0x1000, scoped, tag = 'scratch operand']
  #allocation4 [shape = 'f32[8,32]{1,0:T(8,128)}', space=vmem, size = 0x1000, scoped, tag = 'scratch operand']
  %s0 = inlined_call_operand.hbm [shape: bf16[8,8,128], index: 0, kind: input, shape index: {}]
  %s1 = inlined_call_operand.hbm [shape: bf16[128,128], index: 1, kind: input, shape index: {}]
  %s2 = inlined_call_operand.vmem [shape: f32[1,128], index: 2, kind: input, shape index: {}]
  %s3 = inlined_call_operand.hbm [shape: bf16[32,128], index: 3, kind: input, shape index: {}]
  %s4 = inlined_call_operand.hbm [shape: f32[8,32], index: 4, kind: input, shape index: {}]
  %s5 = inlined_call_operand.vmem [shape: f32[8,32], index: 5, kind: input, shape index: {}]
  %s6 = inlined_call_operand.hbm [shape: bf16[8,8,32], index: 6, kind: output, shape index: {0}]
  %s7 = inlined_call_operand.hbm [shape: f32[8,32], index: 7, kind: output, shape index: {1}]
  %s8 = inlined_call_operand.hbm [shape: f32[8,32], index: 8, kind: output, shape index: {2}]
  %9 = xla_tuple %s6, %s7, %s8
  %s10 = sld [smem:[#allocation0]]
  $region74: #{tpu_custom_call.1} parent=0
    _
  %s12 = ssub.s32 1, %s10
  %s13 = scalar_select 0, %s12, %s10
  $region1: #{tpu_custom_call.1} parent=0
    #allocation5 [shape = 'u8[16384]{0}', space=vmem, size = 0x4000, scoped, tag = 'input window, operand 0, single buffered']
    #allocation6 [shape = 's32[1]{0}', space=sflag, size = 0x4, scoped, tag = 'scoped memory for tpu_custom_call.1']
    #allocation7 [shape = 's32[1]{0}', space=sflag, size = 0x4, scoped, tag = 'scoped memory for tpu_custom_call.1']
    #allocation8 [shape = 'u8[32768]{0}', space=vmem, size = 0x8000, scoped, tag = 'input window, operand 1, single buffered']
    #allocation9 [shape = 's32[1]{0}', space=sflag, size = 0x4, scoped, tag = 'scoped memory for tpu_custom_call.1']
    #allocation10 [shape = 'u8[8192]{0}', space=vmem, size = 0x2000, scoped, tag = 'input window, operand 3, single buffered']
    #allocation11 [shape = 'u8[4096]{0}', space=vmem, size = 0x1000, scoped, tag = 'input window, operand 4, single buffered']
    #allocation12 [shape = 's32[1]{0}', space=sflag, size = 0x4, scoped, tag = 'scoped memory for tpu_custom_call.1']
    #allocation13 [shape = 'u8[16384]{0}', space=vmem, size = 0x4000, scoped, tag = 'output window, operand 0, single buffered']
    #allocation14 [shape = 'u8[4096]{0}', space=vmem, size = 0x1000, scoped, tag = 'output window, operand 1, single buffered']
    #allocation15 [shape = 's32[1]{0}', space=sflag, size = 0x4, scoped, tag = 'scoped memory for tpu_custom_call.1']
    #allocation16 [shape = 'u8[4096]{0}', space=vmem, size = 0x1000, scoped, tag = 'output window, operand 2, single buffered']
    %14 = vsyncpa [#allocation6], 0
    %15 = vsyncpa [#allocation9], 0
    %16 = vsyncpa [#allocation12], 0
    %17 = vsyncpa [#allocation7], 0
    %18 = vsyncpa [#allocation15], 0
    // Predicated region
    $region2: #{tpu_custom_call.1} parent=1 // pred_check
      _
    $region3: #{tpu_custom_call.1} parent=1 // pred_check_branch
      %20 = sbr.rel (0) target = $region5
    $region4: #{tpu_custom_call.1} parent=1 // pred_region
      %s22 = ssub.s32 512, 512
      %23 = vsyncadd [#allocation6], %s22
      %s24 = sshll.u32 [#allocation5], 4
      %s25 = int_to_ptr.vmem [resolvable:$true] %s24
      %30 = dma.hbm_to_vmem [thread:$0]  %s0, 512, %s25, [#allocation6], 64, 64, 4
    $region5: #{tpu_custom_call.1} parent=1 // pred_fallthru
      _
    // Predicated region
    $region6: #{tpu_custom_call.1} parent=1 // pred_check
      _
    $region7: #{tpu_custom_call.1} parent=1 // pred_check_branch
      %32 = sbr.rel (0) target = $region9
    $region8: #{tpu_custom_call.1} parent=1 // pred_region
      %s34 = ssub.s32 1024, 1024
      %35 = vsyncadd [#allocation9], %s34
      %s36 = sshll.u32 [#allocation8], 4
      %s37 = int_to_ptr.vmem [resolvable:$true] %s36
      %42 = dma.hbm_to_vmem [thread:$0]  %s1, 1024, %s37, [#allocation9], 64, 64, 4
    $region9: #{tpu_custom_call.1} parent=1 // pred_fallthru
      _
    // Predicated region
    $region10: #{tpu_custom_call.1} parent=1 // pred_check
      _
    $region11: #{tpu_custom_call.1} parent=1 // pred_check_branch
      %44 = sbr.rel (0) target = $region13
    $region12: #{tpu_custom_call.1} parent=1 // pred_region
      _
    $region13: #{tpu_custom_call.1} parent=1 // pred_fallthru
      _
    // Predicated region
    $region14: #{tpu_custom_call.1} parent=1 // pred_check
      _
    $region15: #{tpu_custom_call.1} parent=1 // pred_check_branch
      %46 = sbr.rel (0) target = $region17
    $region16: #{tpu_custom_call.1} parent=1 // pred_region
      %s48 = ssub.s32 256, 256
      %49 = vsyncadd [#allocation9], %s48
      %s50 = sshll.u32 [#allocation10], 4
      %s51 = int_to_ptr.vmem [resolvable:$true] %s50
      %56 = dma.hbm_to_vmem [thread:$0]  %s3, 256, %s51, [#allocation9], 64, 64, 4
    $region17: #{tpu_custom_call.1} parent=1 // pred_fallthru
      _
    // Predicated region
    $region18: #{tpu_custom_call.1} parent=1 // pred_check
      _
    $region19: #{tpu_custom_call.1} parent=1 // pred_check_branch
      %58 = sbr.rel (0) target = $region21
    $region20: #{tpu_custom_call.1} parent=1 // pred_region
      %s60 = ssub.s32 128, 128
      %61 = vsyncadd [#allocation12], %s60
      %s63 = sshll.u32 [#allocation11], 4
      %s64 = int_to_ptr.vmem [resolvable:$true] %s63
      %66 = dma.hbm_to_vmem [thread:$0]  %s4, 128, %s64, [#allocation12]
    $region21: #{tpu_custom_call.1} parent=1 // pred_fallthru
      _
    // Predicated region
    $region22: #{tpu_custom_call.1} parent=1 // pred_check
      _
    $region23: #{tpu_custom_call.1} parent=1 // pred_check_branch
      %68 = sbr.rel (0) target = $region25
    $region24: #{tpu_custom_call.1} parent=1 // pred_region
      _
    $region25: #{tpu_custom_call.1} parent=1 // pred_fallthru
      _
    // Predicated region
    $region26: #{tpu_custom_call.1} parent=1 // pred_check
      _
    $region27: #{tpu_custom_call.1} parent=1 // pred_check_branch
      %70 = sbr.rel (0) target = $region29
    $region28: #{tpu_custom_call.1} parent=1 // pred_region
      %71 = dma.done [#allocation6], 512
    $region29: #{tpu_custom_call.1} parent=1 // pred_fallthru
      _
    // Predicated region
    $region30: #{tpu_custom_call.1} parent=1 // pred_check
      _
    $region31: #{tpu_custom_call.1} parent=1 // pred_check_branch
      %73 = sbr.rel (0) target = $region33
    $region32: #{tpu_custom_call.1} parent=1 // pred_region
      %74 = dma.done [#allocation9], 1024
    $region33: #{tpu_custom_call.1} parent=1 // pred_fallthru
      _
    // Predicated region
    $region34: #{tpu_custom_call.1} parent=1 // pred_check
      _
    $region35: #{tpu_custom_call.1} parent=1 // pred_check_branch
      %76 = sbr.rel (0) target = $region37
    $region36: #{tpu_custom_call.1} parent=1 // pred_region
      %77 = dma.done [#allocation9], 256
    $region37: #{tpu_custom_call.1} parent=1 // pred_fallthru
      _
    // Predicated region
    $region38: #{tpu_custom_call.1} parent=1 // pred_check
      _
    $region39: #{tpu_custom_call.1} parent=1 // pred_check_branch
      %79 = sbr.rel (0) target = $region41
    $region40: #{tpu_custom_call.1} parent=1 // pred_region
      %80 = dma.done [#allocation12], 128
    $region41: #{tpu_custom_call.1} parent=1 // pred_fallthru
      _
    %p82 = scmp.eq.s32.totalorder 0, 0
    // Predicated region
    $region42: #{tpu_custom_call.1} parent=1 // pred_check
      %p83 = pneg %p82
    $region43: #{tpu_custom_call.1} parent=1 // pred_check_branch
      %85 = sbr.rel (%p83) target = $region45
    $region44: #{tpu_custom_call.1} parent=1 // pred_region
      %v86 = vld [vmem:[#allocation11] sm:$0xff]
      %vm87 = vcmask 261120
      %88 = vst.msk [vmem:[#allocation3] sm:$0xff] %vm87, %v86
      %v89 = vld [vmem:[%s5] sm:$0xff]
      %90 = vst.msk [vmem:[#allocation4] sm:$0xff] %vm87, %v89
    $region45: #{tpu_custom_call.1} parent=1 // pred_fallthru
      _
    %v91 = vld [vmem:[#allocation8] sm:$0xf]
    %v92 = vld [vmem:[#allocation8 + $0x4] sm:$0xf]
    %v93 = vld [vmem:[#allocation8 + $0x8] sm:$0xf]
    %v94 = vld [vmem:[#allocation8 + $0xc] sm:$0xf]
    %v95 = vld [vmem:[#allocation8 + $0x10] sm:$0xf]
    %v96 = vld [vmem:[#allocation8 + $0x14] sm:$0xf]
    %v97 = vld [vmem:[#allocation8 + $0x18] sm:$0xf]
    %v98 = vld [vmem:[#allocation8 + $0x1c] sm:$0xf]
    %v99 = vld [vmem:[#allocation8 + $0x20] sm:$0xf]
    %v100 = vld [vmem:[#allocation8 + $0x24] sm:$0xf]
    %v101 = vld [vmem:[#allocation8 + $0x28] sm:$0xf]
    %v102 = vld [vmem:[#allocation8 + $0x2c] sm:$0xf]
    %v103 = vld [vmem:[#allocation8 + $0x30] sm:$0xf]
    %v104 = vld [vmem:[#allocation8 + $0x34] sm:$0xf]
    %v105 = vld [vmem:[#allocation8 + $0x38] sm:$0xf]
    %v106 = vld [vmem:[#allocation8 + $0x3c] sm:$0xf]
    %v107 = vld [vmem:[%s2] sm:$0x1]
    %v108 = vld [vmem:[#allocation5] sm:$0xf]
    %v110 = vlaneseq
    %v111 = vshrl.u32 %v110, 7
    %v112 = vsub.s32 0, %v111
    %v113 = vrot.slane %v107, %v112
    %v131 = vunpack.c.l.b16 %v91
    %v132 = vunpack.c.l.b16 %v92
    %v133 = vunpack.c.l.b16 %v93
    %v134 = vunpack.c.l.b16 %v94
    %v135 = vunpack.c.l.b16 %v95
    %v136 = vunpack.c.l.b16 %v96
    %v137 = vunpack.c.l.b16 %v97
    %v138 = vunpack.c.l.b16 %v98
    %v139 = vunpack.c.l.b16 %v99
    %v140 = vunpack.c.l.b16 %v100
    %v141 = vunpack.c.l.b16 %v101
    %v142 = vunpack.c.l.b16 %v102
    %v143 = vunpack.c.l.b16 %v103
    %v144 = vunpack.c.l.b16 %v104
    %v145 = vunpack.c.l.b16 %v105
    %v146 = vunpack.c.l.b16 %v106
    %v147 = vpack.c.b16 %v132, %v131
    %v148 = vpack.c.b16 %v134, %v133
    %v149 = vpack.c.b16 %v136, %v135
    %v150 = vpack.c.b16 %v138, %v137
    %v151 = vpack.c.b16 %v140, %v139
    %v152 = vpack.c.b16 %v142, %v141
    %v153 = vpack.c.b16 %v144, %v143
    %v154 = vpack.c.b16 %v146, %v145
    %163 = vmatprep.subr.bf16.mxu0 0
    %164 = vmatpush1.bf16.msra.mxu0 %v154
    %165 = vmatprep.subr.bf16.mxu0 0
    %166 = vmatpush1.bf16.msra.mxu0 %v153
    %167 = vmatprep.subr.bf16.mxu0 0
    %168 = vmatpush1.bf16.msra.mxu0 %v152
    %169 = vmatprep.subr.bf16.mxu0 0
    %170 = vmatpush1.bf16.msra.mxu0 %v151
    %171 = vmatprep.subr.bf16.mxu0 0
    %172 = vmatpush1.bf16.msra.mxu0 %v150
    %173 = vmatprep.subr.bf16.mxu0 0
    %174 = vmatpush1.bf16.msra.mxu0 %v149
    %175 = vmatprep.subr.bf16.mxu0 0
    %176 = vmatpush1.bf16.msra.mxu0 %v148
    %177 = vmatprep.subr.bf16.mxu0 0
    %178 = vmatpush1.bf16.msra.mxu0 %v147
    %179 = vmatprep.subr.bf16.mxu0 0
    %180 = vmatpush2.bf16.msra.mxu0 0
    %181 = vmatprep.subr.bf16.mxu0 0
    %182 = vmatpush2.bf16.msra.mxu0 0
    %183 = vmatprep.subr.bf16.mxu0 0
    %184 = vmatpush2.bf16.msra.mxu0 0
    %185 = vmatprep.subr.bf16.mxu0 0
    %186 = vmatpush2.bf16.msra.mxu0 0
    %187 = vmatprep.subr.bf16.mxu0 0
    %188 = vmatpush2.bf16.msra.mxu0 0
    %189 = vmatprep.subr.bf16.mxu0 0
    %190 = vmatpush2.bf16.msra.mxu0 0
    %191 = vmatprep.subr.bf16.mxu0 0
    %192 = vmatpush2.bf16.msra.mxu0 0
    %193 = vmatprep.subr.bf16.mxu0 0
    %194 = vmatpush2.bf16.msra.mxu0 0
    %195 = vmatprep.mubr.bf16.mxu0 0
    %196 = vmatmul.mubr.bf16.gmra.mxu0 %v108
    %v197 = vpop.f32.mrf.mxu0
    %v198 = vadd.f32 %v113, %v197
    %v199 = vpop.f32.mrf.mxu0
    %v200 = vpop.f32.mrf.mxu0
    %v201 = vpop.f32.mrf.mxu0
    %202 = vdwg.mxu0
    %203 = vst [vmem:[#allocation2] sm:$0xff] %v198
    %s204 = scalar_lea.vmem [#allocation5], 4
    %v205 = vld [vmem:[%s204] sm:$0xf]
    %206 = vmatprep.subr.bf16.mxu0 0
    %207 = vmatpush1.bf16.msra.mxu0 %v154
    %208 = vmatprep.subr.bf16.mxu0 0
    %209 = vmatpush1.bf16.msra.mxu0 %v153
    %210 = vmatprep.subr.bf16.mxu0 0
    %211 = vmatpush1.bf16.msra.mxu0 %v152
    %212 = vmatprep.subr.bf16.mxu0 0
    %213 = vmatpush1.bf16.msra.mxu0 %v151
    %214 = vmatprep.subr.bf16.mxu0 0
    %215 = vmatpush1.bf16.msra.mxu0 %v150
    %216 = vmatprep.subr.bf16.mxu0 0
    %217 = vmatpush1.bf16.msra.mxu0 %v149
    %218 = vmatprep.subr.bf16.mxu0 0
    %219 = vmatpush1.bf16.msra.mxu0 %v148
    %220 = vmatprep.subr.bf16.mxu0 0
    %221 = vmatpush1.bf16.msra.mxu0 %v147
    %222 = vmatprep.subr.bf16.mxu0 0
    %223 = vmatpush2.bf16.msra.mxu0 0
    %224 = vmatprep.subr.bf16.mxu0 0
    %225 = vmatpush2.bf16.msra.mxu0 0
    %226 = vmatprep.subr.bf16.mxu0 0
    %227 = vmatpush2.bf16.msra.mxu0 0
    %228 = vmatprep.subr.bf16.mxu0 0
    %229 = vmatpush2.bf16.msra.mxu0 0
    %230 = vmatprep.subr.bf16.mxu0 0
    %231 = vmatpush2.bf16.msra.mxu0 0
    %232 = vmatprep.subr.bf16.mxu0 0
    %233 = vmatpush2.bf16.msra.mxu0 0
    %234 = vmatprep.subr.bf16.mxu0 0
    %235 = vmatpush2.bf16.msra.mxu0 0
    %236 = vmatprep.subr.bf16.mxu0 0
    %237 = vmatpush2.bf16.msra.mxu0 0
    %238 = vmatprep.mubr.bf16.mxu0 0
    %239 = vmatmul.mubr.bf16.gmra.mxu0 %v205
    %v240 = vpop.f32.mrf.mxu0
    %v241 = vadd.f32 %v113, %v240
    %v242 = vpop.f32.mrf.mxu0
    %v243 = vpop.f32.mrf.mxu0
    %v244 = vpop.f32.mrf.mxu0
    %245 = vdwg.mxu0
    %s246 = scalar_lea.vmem [#allocation2], 8
    %247 = vst [vmem:[%s246] sm:$0xff] %v241
    %s248 = scalar_lea.vmem [#allocation5], 8
    %v249 = vld [vmem:[%s248] sm:$0xf]
    %250 = vmatprep.subr.bf16.mxu0 0
    %251 = vmatpush1.bf16.msra.mxu0 %v154
    %252 = vmatprep.subr.bf16.mxu0 0
    %253 = vmatpush1.bf16.msra.mxu0 %v153
    %254 = vmatprep.subr.bf16.mxu0 0
    %255 = vmatpush1.bf16.msra.mxu0 %v152
    %256 = vmatprep.subr.bf16.mxu0 0
    %257 = vmatpush1.bf16.msra.mxu0 %v151
    %258 = vmatprep.subr.bf16.mxu0 0
    %259 = vmatpush1.bf16.msra.mxu0 %v150
    %260 = vmatprep.subr.bf16.mxu0 0
    %261 = vmatpush1.bf16.msra.mxu0 %v149
    %262 = vmatprep.subr.bf16.mxu0 0
    %263 = vmatpush1.bf16.msra.mxu0 %v148
    %264 = vmatprep.subr.bf16.mxu0 0
    %265 = vmatpush1.bf16.msra.mxu0 %v147
    %266 = vmatprep.subr.bf16.mxu0 0
    %267 = vmatpush2.bf16.msra.mxu0 0
    %268 = vmatprep.subr.bf16.mxu0 0
    %269 = vmatpush2.bf16.msra.mxu0 0
    %270 = vmatprep.subr.bf16.mxu0 0
    %271 = vmatpush2.bf16.msra.mxu0 0
    %272 = vmatprep.subr.bf16.mxu0 0
    %273 = vmatpush2.bf16.msra.mxu0 0
    %274 = vmatprep.subr.bf16.mxu0 0
    %275 = vmatpush2.bf16.msra.mxu0 0
    %276 = vmatprep.subr.bf16.mxu0 0
    %277 = vmatpush2.bf16.msra.mxu0 0
    %278 = vmatprep.subr.bf16.mxu0 0
    %279 = vmatpush2.bf16.msra.mxu0 0
    %280 = vmatprep.subr.bf16.mxu0 0
    %281 = vmatpush2.bf16.msra.mxu0 0
    %282 = vmatprep.mubr.bf16.mxu0 0
    %283 = vmatmul.mubr.bf16.gmra.mxu0 %v249
    %v284 = vpop.f32.mrf.mxu0
    %v285 = vadd.f32 %v113, %v284
    %v286 = vpop.f32.mrf.mxu0
    %v287 = vpop.f32.mrf.mxu0
    %v288 = vpop.f32.mrf.mxu0
    %289 = vdwg.mxu0
    %s290 = scalar_lea.vmem [#allocation2], 16
    %291 = vst [vmem:[%s290] sm:$0xff] %v285
    %s292 = scalar_lea.vmem [#allocation5], 12
    %v293 = vld [vmem:[%s292] sm:$0xf]
    %294 = vmatprep.subr.bf16.mxu0 0
    %295 = vmatpush1.bf16.msra.mxu0 %v154
    %296 = vmatprep.subr.bf16.mxu0 0
    %297 = vmatpush1.bf16.msra.mxu0 %v153
    %298 = vmatprep.subr.bf16.mxu0 0
    %299 = vmatpush1.bf16.msra.mxu0 %v152
    %300 = vmatprep.subr.bf16.mxu0 0
    %301 = vmatpush1.bf16.msra.mxu0 %v151
    %302 = vmatprep.subr.bf16.mxu0 0
    %303 = vmatpush1.bf16.msra.mxu0 %v150
    %304 = vmatprep.subr.bf16.mxu0 0
    %305 = vmatpush1.bf16.msra.mxu0 %v149
    %306 = vmatprep.subr.bf16.mxu0 0
    %307 = vmatpush1.bf16.msra.mxu0 %v148
    %308 = vmatprep.subr.bf16.mxu0 0
    %309 = vmatpush1.bf16.msra.mxu0 %v147
    %310 = vmatprep.subr.bf16.mxu0 0
    %311 = vmatpush2.bf16.msra.mxu0 0
    %312 = vmatprep.subr.bf16.mxu0 0
    %313 = vmatpush2.bf16.msra.mxu0 0
    %314 = vmatprep.subr.bf16.mxu0 0
    %315 = vmatpush2.bf16.msra.mxu0 0
    %316 = vmatprep.subr.bf16.mxu0 0
    %317 = vmatpush2.bf16.msra.mxu0 0
    %318 = vmatprep.subr.bf16.mxu0 0
    %319 = vmatpush2.bf16.msra.mxu0 0
    %320 = vmatprep.subr.bf16.mxu0 0
    %321 = vmatpush2.bf16.msra.mxu0 0
    %322 = vmatprep.subr.bf16.mxu0 0
    %323 = vmatpush2.bf16.msra.mxu0 0
    %324 = vmatprep.subr.bf16.mxu0 0
    %325 = vmatpush2.bf16.msra.mxu0 0
    %326 = vmatprep.mubr.bf16.mxu0 0
    %327 = vmatmul.mubr.bf16.gmra.mxu0 %v293
    %v328 = vpop.f32.mrf.mxu0
    %v329 = vadd.f32 %v113, %v328
    %v330 = vpop.f32.mrf.mxu0
    %v331 = vpop.f32.mrf.mxu0
    %v332 = vpop.f32.mrf.mxu0
    %333 = vdwg.mxu0
    %s334 = scalar_lea.vmem [#allocation2], 24
    %335 = vst [vmem:[%s334] sm:$0xff] %v329
    %s336 = scalar_lea.vmem [#allocation5], 16
    %v337 = vld [vmem:[%s336] sm:$0xf]
    %338 = vmatprep.subr.bf16.mxu0 0
    %339 = vmatpush1.bf16.msra.mxu0 %v154
    %340 = vmatprep.subr.bf16.mxu0 0
    %341 = vmatpush1.bf16.msra.mxu0 %v153
    %342 = vmatprep.subr.bf16.mxu0 0
    %343 = vmatpush1.bf16.msra.mxu0 %v152
    %344 = vmatprep.subr.bf16.mxu0 0
    %345 = vmatpush1.bf16.msra.mxu0 %v151
    %346 = vmatprep.subr.bf16.mxu0 0
    %347 = vmatpush1.bf16.msra.mxu0 %v150
    %348 = vmatprep.subr.bf16.mxu0 0
    %349 = vmatpush1.bf16.msra.mxu0 %v149
    %350 = vmatprep.subr.bf16.mxu0 0
    %351 = vmatpush1.bf16.msra.mxu0 %v148
    %352 = vmatprep.subr.bf16.mxu0 0
    %353 = vmatpush1.bf16.msra.mxu0 %v147
    %354 = vmatprep.subr.bf16.mxu0 0
    %355 = vmatpush2.bf16.msra.mxu0 0
    %356 = vmatprep.subr.bf16.mxu0 0
    %357 = vmatpush2.bf16.msra.mxu0 0
    %358 = vmatprep.subr.bf16.mxu0 0
    %359 = vmatpush2.bf16.msra.mxu0 0
    %360 = vmatprep.subr.bf16.mxu0 0
    %361 = vmatpush2.bf16.msra.mxu0 0
    %362 = vmatprep.subr.bf16.mxu0 0
    %363 = vmatpush2.bf16.msra.mxu0 0
    %364 = vmatprep.subr.bf16.mxu0 0
    %365 = vmatpush2.bf16.msra.mxu0 0
    %366 = vmatprep.subr.bf16.mxu0 0
    %367 = vmatpush2.bf16.msra.mxu0 0
    %368 = vmatprep.subr.bf16.mxu0 0
    %369 = vmatpush2.bf16.msra.mxu0 0
    %370 = vmatprep.mubr.bf16.mxu0 0
    %371 = vmatmul.mubr.bf16.gmra.mxu0 %v337
    %v372 = vpop.f32.mrf.mxu0
    %v373 = vadd.f32 %v113, %v372
    %v374 = vpop.f32.mrf.mxu0
    %v375 = vpop.f32.mrf.mxu0
    %v376 = vpop.f32.mrf.mxu0
    %377 = vdwg.mxu0
    %s378 = scalar_lea.vmem [#allocation2], 32
    %379 = vst [vmem:[%s378] sm:$0xff] %v373
    %s380 = scalar_lea.vmem [#allocation5], 20
    %v381 = vld [vmem:[%s380] sm:$0xf]
    %382 = vmatprep.subr.bf16.mxu0 0
    %383 = vmatpush1.bf16.msra.mxu0 %v154
    %384 = vmatprep.subr.bf16.mxu0 0
    %385 = vmatpush1.bf16.msra.mxu0 %v153
    %386 = vmatprep.subr.bf16.mxu0 0
    %387 = vmatpush1.bf16.msra.mxu0 %v152
    %388 = vmatprep.subr.bf16.mxu0 0
    %389 = vmatpush1.bf16.msra.mxu0 %v151
    %390 = vmatprep.subr.bf16.mxu0 0
    %391 = vmatpush1.bf16.msra.mxu0 %v150
    %392 = vmatprep.subr.bf16.mxu0 0
    %393 = vmatpush1.bf16.msra.mxu0 %v149
    %394 = vmatprep.subr.bf16.mxu0 0
    %395 = vmatpush1.bf16.msra.mxu0 %v148
    %396 = vmatprep.subr.bf16.mxu0 0
    %397 = vmatpush1.bf16.msra.mxu0 %v147
    %398 = vmatprep.subr.bf16.mxu0 0
    %399 = vmatpush2.bf16.msra.mxu0 0
    %400 = vmatprep.subr.bf16.mxu0 0
    %401 = vmatpush2.bf16.msra.mxu0 0
    %402 = vmatprep.subr.bf16.mxu0 0
    %403 = vmatpush2.bf16.msra.mxu0 0
    %404 = vmatprep.subr.bf16.mxu0 0
    %405 = vmatpush2.bf16.msra.mxu0 0
    %406 = vmatprep.subr.bf16.mxu0 0
    %407 = vmatpush2.bf16.msra.mxu0 0
    %408 = vmatprep.subr.bf16.mxu0 0
    %409 = vmatpush2.bf16.msra.mxu0 0
    %410 = vmatprep.subr.bf16.mxu0 0
    %411 = vmatpush2.bf16.msra.mxu0 0
    %412 = vmatprep.subr.bf16.mxu0 0
    %413 = vmatpush2.bf16.msra.mxu0 0
    %414 = vmatprep.mubr.bf16.mxu0 0
    %415 = vmatmul.mubr.bf16.gmra.mxu0 %v381
    %v416 = vpop.f32.mrf.mxu0
    %v417 = vadd.f32 %v113, %v416
    %v418 = vpop.f32.mrf.mxu0
    %v419 = vpop.f32.mrf.mxu0
    %v420 = vpop.f32.mrf.mxu0
    %421 = vdwg.mxu0
    %s422 = scalar_lea.vmem [#allocation2], 40
    %423 = vst [vmem:[%s422] sm:$0xff] %v417
    %s424 = scalar_lea.vmem [#allocation5], 24
    %v425 = vld [vmem:[%s424] sm:$0xf]
    %426 = vmatprep.subr.bf16.mxu0 0
    %427 = vmatpush1.bf16.msra.mxu0 %v154
    %428 = vmatprep.subr.bf16.mxu0 0
    %429 = vmatpush1.bf16.msra.mxu0 %v153
    %430 = vmatprep.subr.bf16.mxu0 0
    %431 = vmatpush1.bf16.msra.mxu0 %v152
    %432 = vmatprep.subr.bf16.mxu0 0
    %433 = vmatpush1.bf16.msra.mxu0 %v151
    %434 = vmatprep.subr.bf16.mxu0 0
    %435 = vmatpush1.bf16.msra.mxu0 %v150
    %436 = vmatprep.subr.bf16.mxu0 0
    %437 = vmatpush1.bf16.msra.mxu0 %v149
    %438 = vmatprep.subr.bf16.mxu0 0
    %439 = vmatpush1.bf16.msra.mxu0 %v148
    %440 = vmatprep.subr.bf16.mxu0 0
    %441 = vmatpush1.bf16.msra.mxu0 %v147
    %442 = vmatprep.subr.bf16.mxu0 0
    %443 = vmatpush2.bf16.msra.mxu0 0
    %444 = vmatprep.subr.bf16.mxu0 0
    %445 = vmatpush2.bf16.msra.mxu0 0
    %446 = vmatprep.subr.bf16.mxu0 0
    %447 = vmatpush2.bf16.msra.mxu0 0
    %448 = vmatprep.subr.bf16.mxu0 0
    %449 = vmatpush2.bf16.msra.mxu0 0
    %450 = vmatprep.subr.bf16.mxu0 0
    %451 = vmatpush2.bf16.msra.mxu0 0
    %452 = vmatprep.subr.bf16.mxu0 0
    %453 = vmatpush2.bf16.msra.mxu0 0
    %454 = vmatprep.subr.bf16.mxu0 0
    %455 = vmatpush2.bf16.msra.mxu0 0
    %456 = vmatprep.subr.bf16.mxu0 0
    %457 = vmatpush2.bf16.msra.mxu0 0
    %458 = vmatprep.mubr.bf16.mxu0 0
    %459 = vmatmul.mubr.bf16.gmra.mxu0 %v425
    %v460 = vpop.f32.mrf.mxu0
    %v461 = vadd.f32 %v113, %v460
    %v462 = vpop.f32.mrf.mxu0
    %v463 = vpop.f32.mrf.mxu0
    %v464 = vpop.f32.mrf.mxu0
    %465 = vdwg.mxu0
    %s466 = scalar_lea.vmem [#allocation2], 48
    %467 = vst [vmem:[%s466] sm:$0xff] %v461
    %s468 = scalar_lea.vmem [#allocation5], 28
    %v469 = vld [vmem:[%s468] sm:$0xf]
    %470 = vmatprep.subr.bf16.mxu0 0
    %471 = vmatpush1.bf16.msra.mxu0 %v154
    %472 = vmatprep.subr.bf16.mxu0 0
    %473 = vmatpush1.bf16.msra.mxu0 %v153
    %474 = vmatprep.subr.bf16.mxu0 0
    %475 = vmatpush1.bf16.msra.mxu0 %v152
    %476 = vmatprep.subr.bf16.mxu0 0
    %477 = vmatpush1.bf16.msra.mxu0 %v151
    %478 = vmatprep.subr.bf16.mxu0 0
    %479 = vmatpush1.bf16.msra.mxu0 %v150
    %480 = vmatprep.subr.bf16.mxu0 0
    %481 = vmatpush1.bf16.msra.mxu0 %v149
    %482 = vmatprep.subr.bf16.mxu0 0
    %483 = vmatpush1.bf16.msra.mxu0 %v148
    %484 = vmatprep.subr.bf16.mxu0 0
    %485 = vmatpush1.bf16.msra.mxu0 %v147
    %486 = vmatprep.subr.bf16.mxu0 0
    %487 = vmatpush2.bf16.msra.mxu0 0
    %488 = vmatprep.subr.bf16.mxu0 0
    %489 = vmatpush2.bf16.msra.mxu0 0
    %490 = vmatprep.subr.bf16.mxu0 0
    %491 = vmatpush2.bf16.msra.mxu0 0
    %492 = vmatprep.subr.bf16.mxu0 0
    %493 = vmatpush2.bf16.msra.mxu0 0
    %494 = vmatprep.subr.bf16.mxu0 0
    %495 = vmatpush2.bf16.msra.mxu0 0
    %496 = vmatprep.subr.bf16.mxu0 0
    %497 = vmatpush2.bf16.msra.mxu0 0
    %498 = vmatprep.subr.bf16.mxu0 0
    %499 = vmatpush2.bf16.msra.mxu0 0
    %500 = vmatprep.subr.bf16.mxu0 0
    %501 = vmatpush2.bf16.msra.mxu0 0
    %502 = vmatprep.mubr.bf16.mxu0 0
    %503 = vmatmul.mubr.bf16.gmra.mxu0 %v469
    %v504 = vpop.f32.mrf.mxu0
    %v505 = vadd.f32 %v113, %v504
    %v506 = vpop.f32.mrf.mxu0
    %v507 = vpop.f32.mrf.mxu0
    %v508 = vpop.f32.mrf.mxu0
    %509 = vdwg.mxu0
    %s510 = scalar_lea.vmem [#allocation2], 56
    %511 = vst [vmem:[%s510] sm:$0xff] %v505
    %v512 = vld [vmem:[#allocation10] sm:$0xf]
    %v513 = vld [vmem:[#allocation10 + $0x4] sm:$0xf]
    %v514 = vld [vmem:[#allocation10 + $0x8] sm:$0xf]
    %v515 = vld [vmem:[#allocation10 + $0xc] sm:$0xf]
    %v516 = vld [vmem:[#allocation3] sm:$0xff]
    %v517 = vld [vmem:[#allocation4] sm:$0xff]
    %v518 = vld [vmem:[#allocation2] sm:$0xff]
    %v519 = vpack.c.bf16 %v516, %v516
    %v524 = vunpack.c.l.b16 %v512
    %v525 = vunpack.c.l.b16 %v513
    %v526 = vunpack.c.l.b16 %v514
    %v527 = vunpack.c.l.b16 %v515
    %v528 = vpack.c.b16 %v525, %v524
    %v529 = vpack.c.b16 %v527, %v526
    %vm532 = vcmask 261120
    %v534 = vsel %vm532, %v519, 0
    %536 = vmatprep.subr.bf16.mxu0 0
    %537 = vmatpush1.bf16.msra.mxu0 0
    %538 = vmatprep.subr.bf16.mxu0 0
    %539 = vmatpush1.bf16.msra.mxu0 0
    %540 = vmatprep.subr.bf16.mxu0 0
    %541 = vmatpush1.bf16.msra.mxu0 0
    %542 = vmatprep.subr.bf16.mxu0 0
    %543 = vmatpush1.bf16.msra.mxu0 0
    %544 = vmatprep.subr.bf16.mxu0 0
    %545 = vmatpush1.bf16.msra.mxu0 0
    %546 = vmatprep.subr.bf16.mxu0 0
    %547 = vmatpush1.bf16.msra.mxu0 0
    %548 = vmatprep.subr.bf16.mxu0 0
    %549 = vmatpush1.bf16.msra.mxu0 %v529
    %550 = vmatprep.subr.bf16.mxu0 0
    %551 = vmatpush1.bf16.msra.mxu0 %v528
    %552 = vmatprep.subr.bf16.mxu0 0
    %553 = vmatpush2.bf16.msra.mxu0 0
    %554 = vmatprep.subr.bf16.mxu0 0
    %555 = vmatpush2.bf16.msra.mxu0 0
    %556 = vmatprep.subr.bf16.mxu0 0
    %557 = vmatpush2.bf16.msra.mxu0 0
    %558 = vmatprep.subr.bf16.mxu0 0
    %559 = vmatpush2.bf16.msra.mxu0 0
    %560 = vmatprep.subr.bf16.mxu0 0
    %561 = vmatpush2.bf16.msra.mxu0 0
    %562 = vmatprep.subr.bf16.mxu0 0
    %563 = vmatpush2.bf16.msra.mxu0 0
    %564 = vmatprep.subr.bf16.mxu0 0
    %565 = vmatpush2.bf16.msra.mxu0 0
    %566 = vmatprep.subr.bf16.mxu0 0
    %567 = vmatpush2.bf16.msra.mxu0 0
    %568 = vmatprep.mubr.bf16.mxu0 0
    %569 = vmatmul.mubr.bf16.gmra.mxu0 %v534
    %v570 = vpop.f32.mrf.mxu0
    %v571 = vadd.f32 0.0, %v570
    %v572 = vpop.f32.mrf.mxu0
    %v573 = vpop.f32.mrf.mxu0
    %v574 = vpop.f32.mrf.mxu0
    %575 = vdwg.mxu0
    %v576 = vadd.f32 %v518, %v571
    %v577 = vxor.u32 %v576, 2147483648
    %v578 = vmul.f32 %v577, 1.442695
    %v579 = vpow.pop %v578
    %v580 = vadd.f32 %v579, 1.0
    %v581 = vrcp.pop %v580
    %v582 = vmul.f32 1.0, %v581
    %v583 = vtanh.pop %v576
    %585 = vrot.lane.b32.xlu0 %v517, 32
    %v586 = vpop.permute.xlu0 %585
    %v588 = vmul.f32 %v582, %v586
    %590 = vrot.lane.b32.xlu0 %v583, 32
    %v591 = vpop.permute.xlu0 %590
    %v593 = vmul.f32 %v582, %v591
    %595 = vrot.lane.b32.xlu0 %v593, 32
    %v596 = vpop.permute.xlu0 %595
    %v598 = vadd.f32 %v588, %v596
    %v599 = vtanh.pop %v598
    %601 = vrot.lane.b32.xlu0 %v599, 32
    %v602 = vpop.permute.xlu0 %601
    %v604 = vmul.f32 %v582, %v602
    %v605 = vpack.c.bf16 %v604, %v604
    %v607 = vunpack.c.l.b16 %v605
    %v608 = vpack.c.b16 %v607, %v607
    %609 = vrot.lane.b32.xlu0 %v608, 64
    %v610 = vpop.permute.xlu0 %609
    %vm612 = vcmask 257024
    %613 = vst.msk [vmem:[#allocation13] sm:$0xf] %vm612, %v610
    %v614 = vld [vmem:[%s246] sm:$0xff]
    %615 = vrot.lane.b32.xlu0 %v605, 64
    %v616 = vpop.permute.xlu0 %615
    %v618 = vsel %vm532, %v616, 0
    %620 = vmatprep.subr.bf16.mxu0 0
    %621 = vmatpush1.bf16.msra.mxu0 0
    %622 = vmatprep.subr.bf16.mxu0 0
    %623 = vmatpush1.bf16.msra.mxu0 0
    %624 = vmatprep.subr.bf16.mxu0 0
    %625 = vmatpush1.bf16.msra.mxu0 0
    %626 = vmatprep.subr.bf16.mxu0 0
    %627 = vmatpush1.bf16.msra.mxu0 0
    %628 = vmatprep.subr.bf16.mxu0 0
    %629 = vmatpush1.bf16.msra.mxu0 0
    %630 = vmatprep.subr.bf16.mxu0 0
    %631 = vmatpush1.bf16.msra.mxu0 0
    %632 = vmatprep.subr.bf16.mxu0 0
    %633 = vmatpush1.bf16.msra.mxu0 %v529
    %634 = vmatprep.subr.bf16.mxu0 0
    %635 = vmatpush1.bf16.msra.mxu0 %v528
    %636 = vmatprep.subr.bf16.mxu0 0
    %637 = vmatpush2.bf16.msra.mxu0 0
    %638 = vmatprep.subr.bf16.mxu0 0
    %639 = vmatpush2.bf16.msra.mxu0 0
    %640 = vmatprep.subr.bf16.mxu0 0
    %641 = vmatpush2.bf16.msra.mxu0 0
    %642 = vmatprep.subr.bf16.mxu0 0
    %643 = vmatpush2.bf16.msra.mxu0 0
    %644 = vmatprep.subr.bf16.mxu0 0
    %645 = vmatpush2.bf16.msra.mxu0 0
    %646 = vmatprep.subr.bf16.mxu0 0
    %647 = vmatpush2.bf16.msra.mxu0 0
    %648 = vmatprep.subr.bf16.mxu0 0
    %649 = vmatpush2.bf16.msra.mxu0 0
    %650 = vmatprep.subr.bf16.mxu0 0
    %651 = vmatpush2.bf16.msra.mxu0 0
    %652 = vmatprep.mubr.bf16.mxu0 0
    %653 = vmatmul.mubr.bf16.gmra.mxu0 %v618
    %v654 = vpop.f32.mrf.mxu0
    %v655 = vadd.f32 0.0, %v654
    %v656 = vpop.f32.mrf.mxu0
    %v657 = vpop.f32.mrf.mxu0
    %v658 = vpop.f32.mrf.mxu0
    %659 = vdwg.mxu0
    %v660 = vadd.f32 %v614, %v655
    %v661 = vxor.u32 %v660, 2147483648
    %v662 = vmul.f32 %v661, 1.442695
    %v663 = vpow.pop %v662
    %v664 = vadd.f32 %v663, 1.0
    %v665 = vrcp.pop %v664
    %v666 = vmul.f32 1.0, %v665
    %v667 = vtanh.pop %v660
    %v668 = vmul.f32 %v666, %v598
    %670 = vrot.lane.b32.xlu0 %v667, 32
    %v671 = vpop.permute.xlu0 %670
    %v673 = vmul.f32 %v666, %v671
    %675 = vrot.lane.b32.xlu0 %v673, 32
    %v676 = vpop.permute.xlu0 %675
    %v678 = vadd.f32 %v668, %v676
    %v679 = vtanh.pop %v678
    %681 = vrot.lane.b32.xlu0 %v679, 32
    %v682 = vpop.permute.xlu0 %681
    %v684 = vmul.f32 %v666, %v682
    %v685 = vpack.c.bf16 %v684, %v684
    %v687 = vunpack.c.l.b16 %v685
    %v688 = vpack.c.b16 %v687, %v687
    %689 = vrot.lane.b32.xlu0 %v688, 64
    %v690 = vpop.permute.xlu0 %689
    %s692 = scalar_lea.vmem [#allocation13], 4
    %693 = vst.msk [vmem:[%s692] sm:$0xf] %vm612, %v690
    %v694 = vld [vmem:[%s290] sm:$0xff]
    %695 = vrot.lane.b32.xlu0 %v685, 64
    %v696 = vpop.permute.xlu0 %695
    %v698 = vsel %vm532, %v696, 0
    %700 = vmatprep.subr.bf16.mxu0 0
    %701 = vmatpush1.bf16.msra.mxu0 0
    %702 = vmatprep.subr.bf16.mxu0 0
    %703 = vmatpush1.bf16.msra.mxu0 0
    %704 = vmatprep.subr.bf16.mxu0 0
    %705 = vmatpush1.bf16.msra.mxu0 0
    %706 = vmatprep.subr.bf16.mxu0 0
    %707 = vmatpush1.bf16.msra.mxu0 0
    %708 = vmatprep.subr.bf16.mxu0 0
    %709 = vmatpush1.bf16.msra.mxu0 0
    %710 = vmatprep.subr.bf16.mxu0 0
    %711 = vmatpush1.bf16.msra.mxu0 0
    %712 = vmatprep.subr.bf16.mxu0 0
    %713 = vmatpush1.bf16.msra.mxu0 %v529
    %714 = vmatprep.subr.bf16.mxu0 0
    %715 = vmatpush1.bf16.msra.mxu0 %v528
    %716 = vmatprep.subr.bf16.mxu0 0
    %717 = vmatpush2.bf16.msra.mxu0 0
    %718 = vmatprep.subr.bf16.mxu0 0
    %719 = vmatpush2.bf16.msra.mxu0 0
    %720 = vmatprep.subr.bf16.mxu0 0
    %721 = vmatpush2.bf16.msra.mxu0 0
    %722 = vmatprep.subr.bf16.mxu0 0
    %723 = vmatpush2.bf16.msra.mxu0 0
    %724 = vmatprep.subr.bf16.mxu0 0
    %725 = vmatpush2.bf16.msra.mxu0 0
    %726 = vmatprep.subr.bf16.mxu0 0
    %727 = vmatpush2.bf16.msra.mxu0 0
    %728 = vmatprep.subr.bf16.mxu0 0
    %729 = vmatpush2.bf16.msra.mxu0 0
    %730 = vmatprep.subr.bf16.mxu0 0
    %731 = vmatpush2.bf16.msra.mxu0 0
    %732 = vmatprep.mubr.bf16.mxu0 0
    %733 = vmatmul.mubr.bf16.gmra.mxu0 %v698
    %v734 = vpop.f32.mrf.mxu0
    %v735 = vadd.f32 0.0, %v734
    %v736 = vpop.f32.mrf.mxu0
    %v737 = vpop.f32.mrf.mxu0
    %v738 = vpop.f32.mrf.mxu0
    %739 = vdwg.mxu0
    %v740 = vadd.f32 %v694, %v735
    %v741 = vxor.u32 %v740, 2147483648
    %v742 = vmul.f32 %v741, 1.442695
    %v743 = vpow.pop %v742
    %v744 = vadd.f32 %v743, 1.0
    %v745 = vrcp.pop %v744
    %v746 = vmul.f32 1.0, %v745
    %v747 = vtanh.pop %v740
    %v748 = vmul.f32 %v746, %v678
    %750 = vrot.lane.b32.xlu0 %v747, 32
    %v751 = vpop.permute.xlu0 %750
    %v753 = vmul.f32 %v746, %v751
    %755 = vrot.lane.b32.xlu0 %v753, 32
    %v756 = vpop.permute.xlu0 %755
    %v758 = vadd.f32 %v748, %v756
    %v759 = vtanh.pop %v758
    %761 = vrot.lane.b32.xlu0 %v759, 32
    %v762 = vpop.permute.xlu0 %761
    %v764 = vmul.f32 %v746, %v762
    %v765 = vpack.c.bf16 %v764, %v764
    %v767 = vunpack.c.l.b16 %v765
    %v768 = vpack.c.b16 %v767, %v767
    %769 = vrot.lane.b32.xlu0 %v768, 64
    %v770 = vpop.permute.xlu0 %769
    %s772 = scalar_lea.vmem [#allocation13], 8
    %773 = vst.msk [vmem:[%s772] sm:$0xf] %vm612, %v770
    %v774 = vld [vmem:[%s334] sm:$0xff]
    %775 = vrot.lane.b32.xlu0 %v765, 64
    %v776 = vpop.permute.xlu0 %775
    %v778 = vsel %vm532, %v776, 0
    %780 = vmatprep.subr.bf16.mxu0 0
    %781 = vmatpush1.bf16.msra.mxu0 0
    %782 = vmatprep.subr.bf16.mxu0 0
    %783 = vmatpush1.bf16.msra.mxu0 0
    %784 = vmatprep.subr.bf16.mxu0 0
    %785 = vmatpush1.bf16.msra.mxu0 0
    %786 = vmatprep.subr.bf16.mxu0 0
    %787 = vmatpush1.bf16.msra.mxu0 0
    %788 = vmatprep.subr.bf16.mxu0 0
    %789 = vmatpush1.bf16.msra.mxu0 0
    %790 = vmatprep.subr.bf16.mxu0 0
    %791 = vmatpush1.bf16.msra.mxu0 0
    %792 = vmatprep.subr.bf16.mxu0 0
    %793 = vmatpush1.bf16.msra.mxu0 %v529
    %794 = vmatprep.subr.bf16.mxu0 0
    %795 = vmatpush1.bf16.msra.mxu0 %v528
    %796 = vmatprep.subr.bf16.mxu0 0
    %797 = vmatpush2.bf16.msra.mxu0 0
    %798 = vmatprep.subr.bf16.mxu0 0
    %799 = vmatpush2.bf16.msra.mxu0 0
    %800 = vmatprep.subr.bf16.mxu0 0
    %801 = vmatpush2.bf16.msra.mxu0 0
    %802 = vmatprep.subr.bf16.mxu0 0
    %803 = vmatpush2.bf16.msra.mxu0 0
    %804 = vmatprep.subr.bf16.mxu0 0
    %805 = vmatpush2.bf16.msra.mxu0 0
    %806 = vmatprep.subr.bf16.mxu0 0
    %807 = vmatpush2.bf16.msra.mxu0 0
    %808 = vmatprep.subr.bf16.mxu0 0
    %809 = vmatpush2.bf16.msra.mxu0 0
    %810 = vmatprep.subr.bf16.mxu0 0
    %811 = vmatpush2.bf16.msra.mxu0 0
    %812 = vmatprep.mubr.bf16.mxu0 0
    %813 = vmatmul.mubr.bf16.gmra.mxu0 %v778
    %v814 = vpop.f32.mrf.mxu0
    %v815 = vadd.f32 0.0, %v814
    %v816 = vpop.f32.mrf.mxu0
    %v817 = vpop.f32.mrf.mxu0
    %v818 = vpop.f32.mrf.mxu0
    %819 = vdwg.mxu0
    %v820 = vadd.f32 %v774, %v815
    %v821 = vxor.u32 %v820, 2147483648
    %v822 = vmul.f32 %v821, 1.442695
    %v823 = vpow.pop %v822
    %v824 = vadd.f32 %v823, 1.0
    %v825 = vrcp.pop %v824
    %v826 = vmul.f32 1.0, %v825
    %v827 = vtanh.pop %v820
    %v828 = vmul.f32 %v826, %v758
    %830 = vrot.lane.b32.xlu0 %v827, 32
    %v831 = vpop.permute.xlu0 %830
    %v833 = vmul.f32 %v826, %v831
    %835 = vrot.lane.b32.xlu0 %v833, 32
    %v836 = vpop.permute.xlu0 %835
    %v838 = vadd.f32 %v828, %v836
    %v839 = vtanh.pop %v838
    %841 = vrot.lane.b32.xlu0 %v839, 32
    %v842 = vpop.permute.xlu0 %841
    %v844 = vmul.f32 %v826, %v842
    %v845 = vpack.c.bf16 %v844, %v844
    %v847 = vunpack.c.l.b16 %v845
    %v848 = vpack.c.b16 %v847, %v847
    %849 = vrot.lane.b32.xlu0 %v848, 64
    %v850 = vpop.permute.xlu0 %849
    %s852 = scalar_lea.vmem [#allocation13], 12
    %853 = vst.msk [vmem:[%s852] sm:$0xf] %vm612, %v850
    %v854 = vld [vmem:[%s378] sm:$0xff]
    %855 = vrot.lane.b32.xlu0 %v845, 64
    %v856 = vpop.permute.xlu0 %855
    %v858 = vsel %vm532, %v856, 0
    %860 = vmatprep.subr.bf16.mxu0 0
    %861 = vmatpush1.bf16.msra.mxu0 0
    %862 = vmatprep.subr.bf16.mxu0 0
    %863 = vmatpush1.bf16.msra.mxu0 0
    %864 = vmatprep.subr.bf16.mxu0 0
    %865 = vmatpush1.bf16.msra.mxu0 0
    %866 = vmatprep.subr.bf16.mxu0 0
    %867 = vmatpush1.bf16.msra.mxu0 0
    %868 = vmatprep.subr.bf16.mxu0 0
    %869 = vmatpush1.bf16.msra.mxu0 0
    %870 = vmatprep.subr.bf16.mxu0 0
    %871 = vmatpush1.bf16.msra.mxu0 0
    %872 = vmatprep.subr.bf16.mxu0 0
    %873 = vmatpush1.bf16.msra.mxu0 %v529
    %874 = vmatprep.subr.bf16.mxu0 0
    %875 = vmatpush1.bf16.msra.mxu0 %v528
    %876 = vmatprep.subr.bf16.mxu0 0
    %877 = vmatpush2.bf16.msra.mxu0 0
    %878 = vmatprep.subr.bf16.mxu0 0
    %879 = vmatpush2.bf16.msra.mxu0 0
    %880 = vmatprep.subr.bf16.mxu0 0
    %881 = vmatpush2.bf16.msra.mxu0 0
    %882 = vmatprep.subr.bf16.mxu0 0
    %883 = vmatpush2.bf16.msra.mxu0 0
    %884 = vmatprep.subr.bf16.mxu0 0
    %885 = vmatpush2.bf16.msra.mxu0 0
    %886 = vmatprep.subr.bf16.mxu0 0
    %887 = vmatpush2.bf16.msra.mxu0 0
    %888 = vmatprep.subr.bf16.mxu0 0
    %889 = vmatpush2.bf16.msra.mxu0 0
    %890 = vmatprep.subr.bf16.mxu0 0
    %891 = vmatpush2.bf16.msra.mxu0 0
    %892 = vmatprep.mubr.bf16.mxu0 0
    %893 = vmatmul.mubr.bf16.gmra.mxu0 %v858
    %v894 = vpop.f32.mrf.mxu0
    %v895 = vadd.f32 0.0, %v894
    %v896 = vpop.f32.mrf.mxu0
    %v897 = vpop.f32.mrf.mxu0
    %v898 = vpop.f32.mrf.mxu0
    %899 = vdwg.mxu0
    %v900 = vadd.f32 %v854, %v895
    %v901 = vxor.u32 %v900, 2147483648
    %v902 = vmul.f32 %v901, 1.442695
    %v903 = vpow.pop %v902
    %v904 = vadd.f32 %v903, 1.0
    %v905 = vrcp.pop %v904
    %v906 = vmul.f32 1.0, %v905
    %v907 = vtanh.pop %v900
    %v908 = vmul.f32 %v906, %v838
    %910 = vrot.lane.b32.xlu0 %v907, 32
    %v911 = vpop.permute.xlu0 %910
    %v913 = vmul.f32 %v906, %v911
    %915 = vrot.lane.b32.xlu0 %v913, 32
    %v916 = vpop.permute.xlu0 %915
    %v918 = vadd.f32 %v908, %v916
    %v919 = vtanh.pop %v918
    %921 = vrot.lane.b32.xlu0 %v919, 32
    %v922 = vpop.permute.xlu0 %921
    %v924 = vmul.f32 %v906, %v922
    %v925 = vpack.c.bf16 %v924, %v924
    %v927 = vunpack.c.l.b16 %v925
    %v928 = vpack.c.b16 %v927, %v927
    %929 = vrot.lane.b32.xlu0 %v928, 64
    %v930 = vpop.permute.xlu0 %929
    %s932 = scalar_lea.vmem [#allocation13], 16
    %933 = vst.msk [vmem:[%s932] sm:$0xf] %vm612, %v930
    %v934 = vld [vmem:[%s422] sm:$0xff]
    %935 = vrot.lane.b32.xlu0 %v925, 64
    %v936 = vpop.permute.xlu0 %935
    %v938 = vsel %vm532, %v936, 0
    %940 = vmatprep.subr.bf16.mxu0 0
    %941 = vmatpush1.bf16.msra.mxu0 0
    %942 = vmatprep.subr.bf16.mxu0 0
    %943 = vmatpush1.bf16.msra.mxu0 0
    %944 = vmatprep.subr.bf16.mxu0 0
    %945 = vmatpush1.bf16.msra.mxu0 0
    %946 = vmatprep.subr.bf16.mxu0 0
    %947 = vmatpush1.bf16.msra.mxu0 0
    %948 = vmatprep.subr.bf16.mxu0 0
    %949 = vmatpush1.bf16.msra.mxu0 0
    %950 = vmatprep.subr.bf16.mxu0 0
    %951 = vmatpush1.bf16.msra.mxu0 0
    %952 = vmatprep.subr.bf16.mxu0 0
    %953 = vmatpush1.bf16.msra.mxu0 %v529
    %954 = vmatprep.subr.bf16.mxu0 0
    %955 = vmatpush1.bf16.msra.mxu0 %v528
    %956 = vmatprep.subr.bf16.mxu0 0
    %957 = vmatpush2.bf16.msra.mxu0 0
    %958 = vmatprep.subr.bf16.mxu0 0
    %959 = vmatpush2.bf16.msra.mxu0 0
    %960 = vmatprep.subr.bf16.mxu0 0
    %961 = vmatpush2.bf16.msra.mxu0 0
    %962 = vmatprep.subr.bf16.mxu0 0
    %963 = vmatpush2.bf16.msra.mxu0 0
    %964 = vmatprep.subr.bf16.mxu0 0
    %965 = vmatpush2.bf16.msra.mxu0 0
    %966 = vmatprep.subr.bf16.mxu0 0
    %967 = vmatpush2.bf16.msra.mxu0 0
    %968 = vmatprep.subr.bf16.mxu0 0
    %969 = vmatpush2.bf16.msra.mxu0 0
    %970 = vmatprep.subr.bf16.mxu0 0
    %971 = vmatpush2.bf16.msra.mxu0 0
    %972 = vmatprep.mubr.bf16.mxu0 0
    %973 = vmatmul.mubr.bf16.gmra.mxu0 %v938
    %v974 = vpop.f32.mrf.mxu0
    %v975 = vadd.f32 0.0, %v974
    %v976 = vpop.f32.mrf.mxu0
    %v977 = vpop.f32.mrf.mxu0
    %v978 = vpop.f32.mrf.mxu0
    %979 = vdwg.mxu0
    %v980 = vadd.f32 %v934, %v975
    %v981 = vxor.u32 %v980, 2147483648
    %v982 = vmul.f32 %v981, 1.442695
    %v983 = vpow.pop %v982
    %v984 = vadd.f32 %v983, 1.0
    %v985 = vrcp.pop %v984
    %v986 = vmul.f32 1.0, %v985
    %v987 = vtanh.pop %v980
    %v988 = vmul.f32 %v986, %v918
    %990 = vrot.lane.b32.xlu0 %v987, 32
    %v991 = vpop.permute.xlu0 %990
    %v993 = vmul.f32 %v986, %v991
    %995 = vrot.lane.b32.xlu0 %v993, 32
    %v996 = vpop.permute.xlu0 %995
    %v998 = vadd.f32 %v988, %v996
    %v999 = vtanh.pop %v998
    %1001 = vrot.lane.b32.xlu0 %v999, 32
    %v1002 = vpop.permute.xlu0 %1001
    %v1004 = vmul.f32 %v986, %v1002
    %v1005 = vpack.c.bf16 %v1004, %v1004
    %v1007 = vunpack.c.l.b16 %v1005
    %v1008 = vpack.c.b16 %v1007, %v1007
    %1009 = vrot.lane.b32.xlu0 %v1008, 64
    %v1010 = vpop.permute.xlu0 %1009
    %s1012 = scalar_lea.vmem [#allocation13], 20
    %1013 = vst.msk [vmem:[%s1012] sm:$0xf] %vm612, %v1010
    %v1014 = vld [vmem:[%s466] sm:$0xff]
    %1015 = vrot.lane.b32.xlu0 %v1005, 64
    %v1016 = vpop.permute.xlu0 %1015
    %v1018 = vsel %vm532, %v1016, 0
    %1020 = vmatprep.subr.bf16.mxu0 0
    %1021 = vmatpush1.bf16.msra.mxu0 0
    %1022 = vmatprep.subr.bf16.mxu0 0
    %1023 = vmatpush1.bf16.msra.mxu0 0
    %1024 = vmatprep.subr.bf16.mxu0 0
    %1025 = vmatpush1.bf16.msra.mxu0 0
    %1026 = vmatprep.subr.bf16.mxu0 0
    %1027 = vmatpush1.bf16.msra.mxu0 0
    %1028 = vmatprep.subr.bf16.mxu0 0
    %1029 = vmatpush1.bf16.msra.mxu0 0
    %1030 = vmatprep.subr.bf16.mxu0 0
    %1031 = vmatpush1.bf16.msra.mxu0 0
    %1032 = vmatprep.subr.bf16.mxu0 0
    %1033 = vmatpush1.bf16.msra.mxu0 %v529
    %1034 = vmatprep.subr.bf16.mxu0 0
    %1035 = vmatpush1.bf16.msra.mxu0 %v528
    %1036 = vmatprep.subr.bf16.mxu0 0
    %1037 = vmatpush2.bf16.msra.mxu0 0
    %1038 = vmatprep.subr.bf16.mxu0 0
    %1039 = vmatpush2.bf16.msra.mxu0 0
    %1040 = vmatprep.subr.bf16.mxu0 0
    %1041 = vmatpush2.bf16.msra.mxu0 0
    %1042 = vmatprep.subr.bf16.mxu0 0
    %1043 = vmatpush2.bf16.msra.mxu0 0
    %1044 = vmatprep.subr.bf16.mxu0 0
    %1045 = vmatpush2.bf16.msra.mxu0 0
    %1046 = vmatprep.subr.bf16.mxu0 0
    %1047 = vmatpush2.bf16.msra.mxu0 0
    %1048 = vmatprep.subr.bf16.mxu0 0
    %1049 = vmatpush2.bf16.msra.mxu0 0
    %1050 = vmatprep.subr.bf16.mxu0 0
    %1051 = vmatpush2.bf16.msra.mxu0 0
    %1052 = vmatprep.mubr.bf16.mxu0 0
    %1053 = vmatmul.mubr.bf16.gmra.mxu0 %v1018
    %v1054 = vpop.f32.mrf.mxu0
    %v1055 = vadd.f32 0.0, %v1054
    %v1056 = vpop.f32.mrf.mxu0
    %v1057 = vpop.f32.mrf.mxu0
    %v1058 = vpop.f32.mrf.mxu0
    %1059 = vdwg.mxu0
    %v1060 = vadd.f32 %v1014, %v1055
    %v1061 = vxor.u32 %v1060, 2147483648
    %v1062 = vmul.f32 %v1061, 1.442695
    %v1063 = vpow.pop %v1062
    %v1064 = vadd.f32 %v1063, 1.0
    %v1065 = vrcp.pop %v1064
    %v1066 = vmul.f32 1.0, %v1065
    %v1067 = vtanh.pop %v1060
    %v1068 = vmul.f32 %v1066, %v998
    %1070 = vrot.lane.b32.xlu0 %v1067, 32
    %v1071 = vpop.permute.xlu0 %1070
    %v1073 = vmul.f32 %v1066, %v1071
    %1075 = vrot.lane.b32.xlu0 %v1073, 32
    %v1076 = vpop.permute.xlu0 %1075
    %v1078 = vadd.f32 %v1068, %v1076
    %v1079 = vtanh.pop %v1078
    %1081 = vrot.lane.b32.xlu0 %v1079, 32
    %v1082 = vpop.permute.xlu0 %1081
    %v1084 = vmul.f32 %v1066, %v1082
    %v1085 = vpack.c.bf16 %v1084, %v1084
    %v1087 = vunpack.c.l.b16 %v1085
    %v1088 = vpack.c.b16 %v1087, %v1087
    %1089 = vrot.lane.b32.xlu0 %v1088, 64
    %v1090 = vpop.permute.xlu0 %1089
    %s1092 = scalar_lea.vmem [#allocation13], 24
    %1093 = vst.msk [vmem:[%s1092] sm:$0xf] %vm612, %v1090
    %v1094 = vld [vmem:[%s510] sm:$0xff]
    %1095 = vrot.lane.b32.xlu0 %v1085, 64
    %v1096 = vpop.permute.xlu0 %1095
    %v1098 = vsel %vm532, %v1096, 0
    %1100 = vmatprep.subr.bf16.mxu0 0
    %1101 = vmatpush1.bf16.msra.mxu0 0
    %1102 = vmatprep.subr.bf16.mxu0 0
    %1103 = vmatpush1.bf16.msra.mxu0 0
    %1104 = vmatprep.subr.bf16.mxu0 0
    %1105 = vmatpush1.bf16.msra.mxu0 0
    %1106 = vmatprep.subr.bf16.mxu0 0
    %1107 = vmatpush1.bf16.msra.mxu0 0
    %1108 = vmatprep.subr.bf16.mxu0 0
    %1109 = vmatpush1.bf16.msra.mxu0 0
    %1110 = vmatprep.subr.bf16.mxu0 0
    %1111 = vmatpush1.bf16.msra.mxu0 0
    %1112 = vmatprep.subr.bf16.mxu0 0
    %1113 = vmatpush1.bf16.msra.mxu0 %v529
    %1114 = vmatprep.subr.bf16.mxu0 0
    %1115 = vmatpush1.bf16.msra.mxu0 %v528
    %1116 = vmatprep.subr.bf16.mxu0 0
    %1117 = vmatpush2.bf16.msra.mxu0 0
    %1118 = vmatprep.subr.bf16.mxu0 0
    %1119 = vmatpush2.bf16.msra.mxu0 0
    %1120 = vmatprep.subr.bf16.mxu0 0
    %1121 = vmatpush2.bf16.msra.mxu0 0
    %1122 = vmatprep.subr.bf16.mxu0 0
    %1123 = vmatpush2.bf16.msra.mxu0 0
    %1124 = vmatprep.subr.bf16.mxu0 0
    %1125 = vmatpush2.bf16.msra.mxu0 0
    %1126 = vmatprep.subr.bf16.mxu0 0
    %1127 = vmatpush2.bf16.msra.mxu0 0
    %1128 = vmatprep.subr.bf16.mxu0 0
    %1129 = vmatpush2.bf16.msra.mxu0 0
    %1130 = vmatprep.subr.bf16.mxu0 0
    %1131 = vmatpush2.bf16.msra.mxu0 0
    %1132 = vmatprep.mubr.bf16.mxu0 0
    %1133 = vmatmul.mubr.bf16.gmra.mxu0 %v1098
    %v1134 = vpop.f32.mrf.mxu0
    %v1135 = vadd.f32 0.0, %v1134
    %v1136 = vpop.f32.mrf.mxu0
    %v1137 = vpop.f32.mrf.mxu0
    %v1138 = vpop.f32.mrf.mxu0
    %1139 = vdwg.mxu0
    %v1140 = vadd.f32 %v1094, %v1135
    %v1141 = vxor.u32 %v1140, 2147483648
    %v1142 = vmul.f32 %v1141, 1.442695
    %v1143 = vpow.pop %v1142
    %v1144 = vadd.f32 %v1143, 1.0
    %v1145 = vrcp.pop %v1144
    %v1146 = vmul.f32 1.0, %v1145
    %v1147 = vtanh.pop %v1140
    %v1148 = vmul.f32 %v1146, %v1078
    %1150 = vrot.lane.b32.xlu0 %v1147, 32
    %v1151 = vpop.permute.xlu0 %1150
    %v1153 = vmul.f32 %v1146, %v1151
    %1155 = vrot.lane.b32.xlu0 %v1153, 32
    %v1156 = vpop.permute.xlu0 %1155
    %v1158 = vadd.f32 %v1148, %v1156
    %v1159 = vtanh.pop %v1158
    %1161 = vrot.lane.b32.xlu0 %v1159, 32
    %v1162 = vpop.permute.xlu0 %1161
    %v1164 = vmul.f32 %v1146, %v1162
    %v1165 = vpack.c.bf16 %v1164, %v1164
    %v1167 = vunpack.c.l.b16 %v1165
    %v1168 = vpack.c.b16 %v1167, %v1167
    %1169 = vrot.lane.b32.xlu0 %v1168, 64
    %v1170 = vpop.permute.xlu0 %1169
    %s1172 = scalar_lea.vmem [#allocation13], 28
    %1173 = vst.msk [vmem:[%s1172] sm:$0xf] %vm612, %v1170
    %1175 = vrot.lane.b32.xlu0 %v1164, 64
    %v1176 = vpop.permute.xlu0 %1175
    %1178 = vst.msk [vmem:[#allocation3] sm:$0xff] %vm532, %v1176
    %1180 = vrot.lane.b32.xlu0 %v1158, 96
    %v1181 = vpop.permute.xlu0 %1180
    %1183 = vst.msk [vmem:[#allocation4] sm:$0xff] %vm532, %v1181
    // Predicated region
    $region46: #{tpu_custom_call.1} parent=1 // pred_check
      %p1184 = pneg %p82
    $region47: #{tpu_custom_call.1} parent=1 // pred_check_branch
      %1186 = sbr.rel (%p1184) target = $region49
    $region48: #{tpu_custom_call.1} parent=1 // pred_region
      %1187 = vst.msk [vmem:[#allocation14] sm:$0xff] %vm532, %v1176
      %1188 = vst.msk [vmem:[#allocation16] sm:$0xff] %vm532, %v1181
    $region49: #{tpu_custom_call.1} parent=1 // pred_fallthru
      _
    // Predicated region
    $region50: #{tpu_custom_call.1} parent=1 // pred_check
      _
    $region51: #{tpu_custom_call.1} parent=1 // pred_check_branch
      %1190 = sbr.rel (0) target = $region53
    $region52: #{tpu_custom_call.1} parent=1 // pred_region
      %s1192 = ssub.s32 512, 512
      %1193 = vsyncadd [#allocation7], %s1192
      %s1194 = sshll.u32 [#allocation13], 4
      %s1195 = int_to_ptr.vmem [resolvable:$true] %s1194
      %1200 = dma.vmem_to_hbm [thread:$0]  %s1195, 512, %s6, [#allocation7], 64, 64, 4
    $region53: #{tpu_custom_call.1} parent=1 // pred_fallthru
      _
    // Predicated region
    $region54: #{tpu_custom_call.1} parent=1 // pred_check
      _
    $region55: #{tpu_custom_call.1} parent=1 // pred_check_branch
      %1202 = sbr.rel (0) target = $region57
    $region56: #{tpu_custom_call.1} parent=1 // pred_region
      %s1204 = ssub.s32 128, 128
      %1205 = vsyncadd [#allocation15], %s1204
      %s1207 = sshll.u32 [#allocation14], 4
      %s1208 = int_to_ptr.vmem [resolvable:$true] %s1207
      %1210 = dma.vmem_to_hbm [thread:$0]  %s1208, 128, %s7, [#allocation15]
    $region57: #{tpu_custom_call.1} parent=1 // pred_fallthru
      _
    // Predicated region
    $region58: #{tpu_custom_call.1} parent=1 // pred_check
      _
    $region59: #{tpu_custom_call.1} parent=1 // pred_check_branch
      %1212 = sbr.rel (0) target = $region61
    $region60: #{tpu_custom_call.1} parent=1 // pred_region
      %s1214 = ssub.s32 128, 128
      %1215 = vsyncadd [#allocation15], %s1214
      %s1217 = sshll.u32 [#allocation16], 4
      %s1218 = int_to_ptr.vmem [resolvable:$true] %s1217
      %1220 = dma.vmem_to_hbm [thread:$0]  %s1218, 128, %s8, [#allocation15]
    $region61: #{tpu_custom_call.1} parent=1 // pred_fallthru
      _
    // Predicated region
    $region62: #{tpu_custom_call.1} parent=1 // pred_check
      _
    $region63: #{tpu_custom_call.1} parent=1 // pred_check_branch
      %1222 = sbr.rel (0) target = $region65
    $region64: #{tpu_custom_call.1} parent=1 // pred_region
      %1223 = dma.done [#allocation7], 512
    $region65: #{tpu_custom_call.1} parent=1 // pred_fallthru
      _
    // Predicated region
    $region66: #{tpu_custom_call.1} parent=1 // pred_check
      _
    $region67: #{tpu_custom_call.1} parent=1 // pred_check_branch
      %1225 = sbr.rel (0) target = $region69
    $region68: #{tpu_custom_call.1} parent=1 // pred_region
      %1226 = dma.done [#allocation15], 128
    $region69: #{tpu_custom_call.1} parent=1 // pred_fallthru
      _
    // Predicated region
    $region70: #{tpu_custom_call.1} parent=1 // pred_check
      _
    $region71: #{tpu_custom_call.1} parent=1 // pred_check_branch
      %1228 = sbr.rel (0) target = $region73
    $region72: #{tpu_custom_call.1} parent=1 // pred_region
      %1229 = dma.done [#allocation15], 128
    $region73: #{tpu_custom_call.1} parent=1 // pred_fallthru
      _
    %1230 = vsyncpa [#allocation6], 1
    %1231 = vsyncpa [#allocation9], 1
    %1232 = vsyncpa [#allocation12], 1
    %1233 = vsyncpa [#allocation7], 1
    %1234 = vsyncpa [#allocation15], 1

</llo_original>
